<compile_context>
chip_gen: v5e
topology: v5e:2x2
jax: 0.10.0
libtpu: 0.0.40
codegen_flags: <defaults>
</compile_context>

<pallas_src>
import functools

import jax
import jax.numpy as jnp
from jax import lax
from jax.experimental import pallas as pl
from jax.experimental.pallas import tpu as pltpu


def _round_up(a, b):
    return (a + b - 1) // b * b


def _abmil_kernel(lens_ref,            # scalar prefetch: (B,) int32 in SMEM
                  x_ref,               # (1, NT, E)  VMEM  bf16 bag tile
                  w1t_ref,             # (E, P)      VMEM  bf16 W1 pre-transposed
                  b1_ref,              # (1, P)      VMEM  f32
                  alpha_ref,           # (1,)        SMEM  f32 PReLU slope
                  w2_ref,              # (C, P)      VMEM  f32
                  b2_ref,              # (C, 1)      VMEM  f32
                  a_ref,               # out (1, C, N_pad)  lane-dense attention
                  bagg_ref,            # out (1, C, E)
                  p_sc,                # (nk, C, NT) f32  stashed exp(logits - m_k)
                  mtile_sc,            # (nk, C, 1)  f32  running max at tile k
                  m_sc,                # (C, 1) f32  running max
                  l_sc,                # (C, 1) f32  running sum(exp)
                  acc_sc,              # (C, E) f32  running unnormalized agg
                  *, num_tiles):
    i = pl.program_id(0)               # bag index
    k = pl.program_id(1)               # tile index along the bag axis
    nt = x_ref.shape[1]

    @pl.when(k == 0)
    def _init():
        m_sc[...] = jnp.full_like(m_sc, -jnp.inf)
        l_sc[...] = jnp.zeros_like(l_sc)
        acc_sc[...] = jnp.zeros_like(acc_sc)

    x_t = x_ref[0]                                              # (NT, E) bf16

    # ---- attention MLP: Linear -> PReLU -> Linear ------------------------
    # bf16 x bf16 -> f32 on the MXU (W1 pre-transposed in the wrapper).
    s1 = jnp.dot(x_t, w1t_ref[...], preferred_element_type=jnp.float32)
    s1 = s1 + b1_ref[...]                                       # (NT, P) f32
    alpha = alpha_ref[0]
    s1 = jnp.where(s1 > 0, s1, alpha * s1)                      # PReLU

    # Second Linear directly in the lane-dense (C, NT) layout: contract P with P
    # via dot_general -- no transpose materialized in the kernel.
    logits = lax.dot_general(w2_ref[...], s1,
                             dimension_numbers=(((1,), (1,)), ((), ())),
                             preferred_element_type=jnp.float32)
    logits = logits + b2_ref[...]                               # (C, NT) f32

    # ---- instance masking (bag positions live on the 128-lane axis).
    # Padded rows (n >= N) are masked out here as well.
    pos = k * nt + lax.broadcasted_iota(jnp.int32, logits.shape, 1)
    logits = jnp.where(pos < lens_ref[i], logits, -jnp.inf)

    # ---- online (flash-style) softmax stats + weighted-sum accumulation --
    # NOTE: a zero-length bag keeps m == -inf and yields NaN attention, which is
    # exactly what the PyTorch softmax of an all--inf row produces.
    m_prev = m_sc[...]
    m_new = jnp.maximum(m_prev, jnp.max(logits, axis=-1, keepdims=True))
    scale = jnp.exp(m_prev - m_new)
    p = jnp.exp(logits - m_new)                                 # (C, NT) f32

    # Stash p (computed anyway) and the running max used for it; finalize then
    # only needs cheap VPU rescales instead of re-exponentiating the whole bag.
    p_sc[k] = p
    mtile_sc[k] = m_new

    l_sc[...] = l_sc[...] * scale + jnp.sum(p, axis=-1, keepdims=True)
    # p is cast to bf16 so the aggregation matmul also runs the native bf16 MXU
    # path against the bf16 x tile; the accumulator stays f32.
    acc_sc[...] = acc_sc[...] * scale + jnp.dot(
        p.astype(jnp.bfloat16), x_t, preferred_element_type=jnp.float32)
    m_sc[...] = m_new

    # ---- finalize on the last bag tile ------------------------------------
    @pl.when(k == num_tiles - 1)
    def _finalize():
        m_fin = m_sc[...]
        l = l_sc[...]
        r = pl.reciprocal(l, approx=True)       # EUP vrcp (free VLIW slot)
        r = r * (2.0 - l * r)                   # one Newton step -> ~f32 exact
        for t in range(num_tiles):              # static unroll, nk is small
            corr = jnp.exp(mtile_sc[t] - m_fin) * r             # (C, 1)
            a_ref[0, :, t * nt:(t + 1) * nt] = p_sc[t] * corr
        bagg_ref[0] = acc_sc[...] * r                           # (C, E)


def abmil_forward(x, bag_lens, w1, b1, alpha, w2, b2, n_tile=None):
    """ABMIL forward. x: (B, N, E); bag_lens: (B,). Returns (A, Bagg, None) with
    A: (B, N, C), Bagg: (B, C, E), matching the PyTorch module (gated=False)."""
    B, N, E = x.shape
    P = w1.shape[0]
    C = w2.shape[0]

    alpha_arr = jnp.asarray(alpha, jnp.float32).reshape(-1)
    assert alpha_arr.shape[0] == 1, \
        "only nn.PReLU(num_parameters=1) (the module default) is supported"

    # ---- tile-size selection from a VMEM budget + bag padding --------------
    # Budget ~8 MiB for the double-buffered bf16 x tile, cap at 2048 rows; pad the
    # bag axis up to a multiple of the tile (masking handles the padded rows).
    n_pad128 = _round_up(max(N, 1), 128)
    if n_tile is None:
        x_tile_budget = 8 << 20                       # bytes for 2x bf16 x tiles
        cap = max(128, min(2048, (x_tile_budget // (2 * E * 2)) // 128 * 128))
    else:
        cap = max(128, _round_up(int(n_tile), 128))
    if n_pad128 <= cap:
        nt, nk = n_pad128, 1
    else:
        nk = pl.cdiv(n_pad128, cap)
        nt = _round_up(pl.cdiv(n_pad128, nk), 128)
        nk = pl.cdiv(n_pad128, nt)
    n_pad = nt * nk

    # bf16 streaming of x and W1^T (softmax / accumulation stay f32 in-kernel).
    x_bf = jnp.asarray(x, jnp.bfloat16)
    if n_pad != N:
        x_bf = jnp.pad(x_bf, ((0, 0), (0, n_pad - N), (0, 0)))
    w1t = jnp.asarray(w1, jnp.float32).T.astype(jnp.bfloat16)   # (E, P)
    b1r = jnp.asarray(b1, jnp.float32).reshape(1, P)
    w2m = jnp.asarray(w2, jnp.float32)                          # (C, P)
    b2c = jnp.asarray(b2, jnp.float32).reshape(C, 1)
    lens = jnp.asarray(bag_lens, jnp.int32)

    grid_spec = pltpu.PrefetchScalarGridSpec(
        num_scalar_prefetch=1,
        grid=(B, nk),
        in_specs=[
            pl.BlockSpec((1, nt, E), lambda i, k, lens: (i, k, 0)),   # x (bf16)
            pl.BlockSpec((E, P), lambda i, k, lens: (0, 0)),          # W1^T (bf16)
            pl.BlockSpec((1, P), lambda i, k, lens: (0, 0)),          # b1
            pl.BlockSpec(memory_space=pltpu.MemorySpace.SMEM),        # alpha
            pl.BlockSpec((C, P), lambda i, k, lens: (0, 0)),          # W2
            pl.BlockSpec((C, 1), lambda i, k, lens: (0, 0)),          # b2
        ],
        out_specs=[
            pl.BlockSpec((1, C, n_pad), lambda i, k, lens: (i, 0, 0)),  # A lane-dense
            pl.BlockSpec((1, C, E), lambda i, k, lens: (i, 0, 0)),      # Bagg
        ],
        scratch_shapes=[
            pltpu.VMEM((nk, C, nt), jnp.float32),   # stashed p per tile
            pltpu.VMEM((nk, C, 1), jnp.float32),    # running max used per tile
            pltpu.VMEM((C, 1), jnp.float32),        # running max
            pltpu.VMEM((C, 1), jnp.float32),        # running denom
            pltpu.VMEM((C, E), jnp.float32),        # running weighted sum
        ],
    )

    a_cn, bagg = pl.pallas_call(
        functools.partial(_abmil_kernel, num_tiles=nk),
        grid_spec=grid_spec,
        out_shape=(
            jax.ShapeDtypeStruct((B, C, n_pad), jnp.float32),
            jax.ShapeDtypeStruct((B, C, E), jnp.float32),
        ),
        compiler_params=pltpu.CompilerParams(
            dimension_semantics=("parallel", "arbitrary"),
            vmem_limit_bytes=32 * 1024 * 1024,
        ),
    )(lens, x_bf, w1t, b1r, alpha_arr, w2m, b2c)

    # Back to the PyTorch (B, N, C) attention layout, dropping bag padding.
    A = jnp.swapaxes(a_cn, 1, 2)[:, :N, :]
    return A, bagg, None


def _reference(x, bag_lens, w1, b1, alpha, w2, b2):
    """Pure-JAX reference mirroring the PyTorch forward; x / W1 are rounded to
    bf16 to match the kernel's streaming precision."""
    hi = lax.Precision.HIGHEST
    xb = x.astype(jnp.bfloat16).astype(jnp.float32)
    w1b = w1.astype(jnp.bfloat16).astype(jnp.float32)
    s1 = jnp.einsum('bne,pe->bnp', xb, w1b, precision=hi) + b1
    s1 = jnp.where(s1 > 0, s1, alpha * s1)
    logits = jnp.einsum('bnp,cp->bnc', s1, w2, precision=hi) + b2     # (B, N, C)
    n_idx = jnp.arange(x.shape[1])[None, :, None]
    mask = n_idx < bag_lens[:, None, None]
    logits = jnp.where(mask, logits, -jnp.inf)
    A = jax.nn.softmax(logits, axis=1)
    Bagg = jnp.einsum('bnc,bne->bce', A, xb, precision=hi)
    return A, Bagg


if __name__ == "__main__":
    # Small shapes consistent with the module defaults (gated=False, C=1,
    # proj_size=128, embedding_size=512).  bag=200 is intentionally NOT a
    # multiple of 128 to exercise the padding path (no shape assert anymore).
    batch, bag, embedding_size, proj_size, num_classes = 2, 200, 512, 128, 1

    key = jax.random.PRNGKey(0)
    kx, k1, kb1, k2, kb2 = jax.random.split(key, 5)

    x = jax.random.normal(kx, (batch, bag, embedding_size), dtype=jnp.float32)
    bag_lens = jnp.array([173, 200], dtype=jnp.int32)

    # deterministic synthetic parameters (PyTorch-Linear-like uniform init)
    lim1 = 1.0 / (embedding_size ** 0.5)
    w1 = jax.random.uniform(k1, (proj_size, embedding_size),
                            minval=-lim1, maxval=lim1, dtype=jnp.float32)
    b1 = jax.random.uniform(kb1, (proj_size,),
                            minval=-lim1, maxval=lim1, dtype=jnp.float32)
    alpha = jnp.float32(0.25)                    # PReLU default slope
    lim2 = 1.0 / (proj_size ** 0.5)
    w2 = jax.random.uniform(k2, (num_classes, proj_size),
                            minval=-lim2, maxval=lim2, dtype=jnp.float32)
    b2 = jax.random.uniform(kb2, (num_classes,),
                            minval=-lim2, maxval=lim2, dtype=jnp.float32)

    A_ref, B_ref = _reference(x, bag_lens, w1, b1, alpha, w2, b2)

    # Run both the budget-derived single-tile path and the multi-tile
    # (online-softmax + per-tile p stash) path.
    for nt in (None, 128):
        A, Bagg, _ = abmil_forward(x, bag_lens, w1, b1, alpha, w2, b2, n_tile=nt)
        jax.block_until_ready((A, Bagg))
        assert A.shape == (batch, bag, num_classes)
        assert Bagg.shape == (batch, num_classes, embedding_size)
        a_err = float(jnp.max(jnp.abs(A - A_ref)))
        b_err = float(jnp.max(jnp.abs(Bagg - B_ref)))
        assert jnp.allclose(A, A_ref, atol=5e-4, rtol=1e-2), a_err
        # Bagg tolerance is looser: the online (unnormalized) accumulation uses
        # bf16 p / bf16 x on the MXU, which rounds differently from the
        # reference's post-softmax f32 contraction.
        assert jnp.allclose(Bagg, B_ref, atol=2e-2, rtol=2e-2), b_err

    print("KERNEL_OK")
</pallas_src>

<mosaic_0001>
module attributes {stable_mosaic.version = 11 : i64} {
  func.func @_abmil_kernel(%arg0: i32, %arg1: i32, %arg2: memref<2xi32, #tpu.memory_space<smem>>, %arg3: memref<1x256x512xbf16, #tpu.memory_space<vmem>>, %arg4: memref<512x128xbf16, #tpu.memory_space<vmem>>, %arg5: memref<1x128xf32, #tpu.memory_space<vmem>>, %arg6: memref<1xf32, #tpu.memory_space<smem>>, %arg7: memref<1x128xf32, #tpu.memory_space<vmem>>, %arg8: memref<1x1xf32, #tpu.memory_space<vmem>>, %arg9: memref<1x1x256xf32, #tpu.memory_space<vmem>>, %arg10: memref<1x1x512xf32, #tpu.memory_space<vmem>>, %arg11: memref<1x1x256xf32, #tpu.memory_space<vmem>>, %arg12: memref<1x1x1xf32, #tpu.memory_space<vmem>>, %arg13: memref<1x1xf32, #tpu.memory_space<vmem>>, %arg14: memref<1x1xf32, #tpu.memory_space<vmem>>, %arg15: memref<1x512xf32, #tpu.memory_space<vmem>>) attributes {dimension_semantics = [#tpu.dimension_semantics<parallel>, #tpu.dimension_semantics<arbitrary>], iteration_bounds = array<i64: 2, 1>, scalar_prefetch = 1 : i64, scratch_operands = 5 : i64, tpu.core_type = #tpu.core_type<tc>, window_params = [{transform_indices = @transform_0, window_bounds = array<i64: 1, 256, 512>}, {pipeline_mode = #tpu.pipeline_mode<synchronous>, transform_indices = @transform_1, window_bounds = array<i64: 512, 128>}, {pipeline_mode = #tpu.pipeline_mode<synchronous>, transform_indices = @transform_2, window_bounds = array<i64: 1, 128>}, {transform_indices = @transform_3, window_bounds = array<i64: 1>}, {pipeline_mode = #tpu.pipeline_mode<synchronous>, transform_indices = @transform_4, window_bounds = array<i64: 1, 128>}, {pipeline_mode = #tpu.pipeline_mode<synchronous>, transform_indices = @transform_5, window_bounds = array<i64: 1, 1>}, {transform_indices = @transform_6, window_bounds = array<i64: 1, 1, 256>}, {transform_indices = @transform_7, window_bounds = array<i64: 1, 1, 512>}]} {
    %c0_i32 = arith.constant 0 : i32
    %0 = arith.cmpi eq, %arg1, %c0_i32 : i32
    %1 = arith.extui %0 : i1 to i32
    %c0_i32_0 = arith.constant 0 : i32
    %2 = arith.cmpi ne, %1, %c0_i32_0 : i32
    scf.if %2 {
      %cst_36 = arith.constant 0xFF800000 : f32
      %65 = vector.broadcast %cst_36 : f32 to vector<1x1xf32>
      %c0_37 = arith.constant 0 : index
      %c0_38 = arith.constant 0 : index
      %66 = vector.load %arg13[%c0_37, %c0_38] : memref<1x1xf32, #tpu.memory_space<vmem>>, vector<1x1xf32>
      tpu.vector_store %arg13[%c0_37, %c0_38], %65 {strides = array<i32>} : memref<1x1xf32, #tpu.memory_space<vmem>>, vector<1x1xf32>,
      %cst_39 = arith.constant 0.000000e+00 : f32
      %67 = vector.broadcast %cst_39 : f32 to vector<1x1xf32>
      %c0_40 = arith.constant 0 : index
      %c0_41 = arith.constant 0 : index
      %68 = vector.load %arg14[%c0_40, %c0_41] : memref<1x1xf32, #tpu.memory_space<vmem>>, vector<1x1xf32>
      tpu.vector_store %arg14[%c0_40, %c0_41], %67 {strides = array<i32>} : memref<1x1xf32, #tpu.memory_space<vmem>>, vector<1x1xf32>,
      %cst_42 = arith.constant 0.000000e+00 : f32
      %69 = vector.broadcast %cst_42 : f32 to vector<1x512xf32>
      %c0_43 = arith.constant 0 : index
      %c0_44 = arith.constant 0 : index
      %70 = vector.load %arg15[%c0_43, %c0_44] : memref<1x512xf32, #tpu.memory_space<vmem>>, vector<1x512xf32>
      tpu.vector_store %arg15[%c0_43, %c0_44], %69 {strides = array<i32>} : memref<1x512xf32, #tpu.memory_space<vmem>>, vector<1x512xf32>,
    } else {
    }
    %c0 = arith.constant 0 : index
    %c0_1 = arith.constant 0 : index
    %c0_2 = arith.constant 0 : index
    %3 = vector.load %arg3[%c0, %c0_1, %c0_2] : memref<1x256x512xbf16, #tpu.memory_space<vmem>>, vector<1x256x512xbf16>
    %4 = vector.shape_cast %3 : vector<1x256x512xbf16> to vector<256x512xbf16>
    %c0_3 = arith.constant 0 : index
    %c0_4 = arith.constant 0 : index
    %5 = vector.load %arg4[%c0_3, %c0_4] : memref<512x128xbf16, #tpu.memory_space<vmem>>, vector<512x128xbf16>
    %cst = arith.constant dense<0.000000e+00> : vector<256x128xf32>
    %6 = tpu.matmul %4, %5, %cst {dimension_numbers = #tpu.dot_dimension_numbers<[1], [0], [0], [1], [0, 0, 1, 1], [], []>} : vector<256x512xbf16>, vector<512x128xbf16>, vector<256x128xf32> -> vector<256x128xf32>
    %c0_5 = arith.constant 0 : index
    %c0_6 = arith.constant 0 : index
    %7 = vector.load %arg5[%c0_5, %c0_6] : memref<1x128xf32, #tpu.memory_space<vmem>>, vector<1x128xf32>
    %8 = vector.broadcast %7 : vector<1x128xf32> to vector<256x128xf32>
    %9 = arith.addf %6, %8 : vector<256x128xf32>
    %c0_7 = arith.constant 0 : index
    %10 = memref.load %arg6[%c0_7] : memref<1xf32, #tpu.memory_space<smem>>
    %cst_8 = arith.constant 0.000000e+00 : f32
    %11 = vector.broadcast %cst_8 : f32 to vector<256x128xf32>
    %12 = arith.cmpf ogt, %9, %11 : vector<256x128xf32>
    %13 = vector.broadcast %10 : f32 to vector<256x128xf32>
    %14 = arith.mulf %13, %9 : vector<256x128xf32>
    %15 = arith.select %12, %9, %14 : vector<256x128xi1>, vector<256x128xf32>
    %c0_9 = arith.constant 0 : index
    %c0_10 = arith.constant 0 : index
    %16 = vector.load %arg7[%c0_9, %c0_10] : memref<1x128xf32, #tpu.memory_space<vmem>>, vector<1x128xf32>
    %cst_11 = arith.constant dense<0.000000e+00> : vector<1x256xf32>
    %17 = tpu.matmul %16, %15, %cst_11 {dimension_numbers = #tpu.dot_dimension_numbers<[1], [1], [0], [0], [0, 0, 1, 0], [], []>} : vector<1x128xf32>, vector<256x128xf32>, vector<1x256xf32> -> vector<1x256xf32>
    %c0_12 = arith.constant 0 : index
    %c0_13 = arith.constant 0 : index
    %18 = vector.load %arg8[%c0_12, %c0_13] : memref<1x1xf32, #tpu.memory_space<vmem>>, vector<1x1xf32>
    %19 = vector.broadcast %18 : vector<1x1xf32> to vector<1x256xf32>
    %20 = arith.addf %17, %19 : vector<1x256xf32>
    %c256_i32 = arith.constant 256 : i32
    %21 = arith.muli %arg1, %c256_i32 : i32
    %22 = tpu.iota {dimensions = array<i32: 1>} : vector<1x256xi32>
    %23 = vector.broadcast %21 : i32 to vector<1x256xi32>
    %24 = arith.addi %23, %22 : vector<1x256xi32>
    %25 = arith.index_cast %arg0 : i32 to index
    %26 = memref.load %arg2[%25] : memref<2xi32, #tpu.memory_space<smem>>
    %27 = vector.broadcast %26 : i32 to vector<1x256xi32>
    %28 = arith.cmpi slt, %24, %27 : vector<1x256xi32>
    %cst_14 = arith.constant 0xFF800000 : f32
    %29 = vector.broadcast %cst_14 : f32 to vector<1x256xf32>
    %30 = arith.select %28, %20, %29 : vector<1x256xi1>, vector<1x256xf32>
    %c0_15 = arith.constant 0 : index
    %c0_16 = arith.constant 0 : index
    %31 = vector.load %arg13[%c0_15, %c0_16] : memref<1x1xf32, #tpu.memory_space<vmem>>, vector<1x1xf32>
    %cst_17 = arith.constant dense<0xFF800000> : vector<1xf32>
    %32 = vector.multi_reduction <maximumf>, %30, %cst_17 [1] : vector<1x256xf32> to vector<1xf32>
    %33 = vector.shape_cast %32 : vector<1xf32> to vector<1x1xf32>
    %34 = arith.maximumf %31, %33 : vector<1x1xf32>
    %35 = arith.subf %31, %34 : vector<1x1xf32>
    %36 = math.exp %35 : vector<1x1xf32>
    %37 = vector.broadcast %34 : vector<1x1xf32> to vector<1x256xf32>
    %38 = arith.subf %30, %37 : vector<1x256xf32>
    %39 = math.exp %38 : vector<1x256xf32>
    %40 = arith.index_cast %arg1 : i32 to index
    %c0_18 = arith.constant 0 : index
    %c0_19 = arith.constant 0 : index
    %41 = vector.load %arg11[%40, %c0_18, %c0_19] : memref<1x1x256xf32, #tpu.memory_space<vmem>>, vector<1x1x256xf32>
    %42 = vector.shape_cast %41 : vector<1x1x256xf32> to vector<1x256xf32>
    %43 = vector.shape_cast %39 : vector<1x256xf32> to vector<1x1x256xf32>
    tpu.vector_store %arg11[%40, %c0_18, %c0_19], %43 {strides = array<i32>} : memref<1x1x256xf32, #tpu.memory_space<vmem>>, vector<1x1x256xf32>,
    %44 = arith.index_cast %arg1 : i32 to index
    %c0_20 = arith.constant 0 : index
    %c0_21 = arith.constant 0 : index
    %45 = vector.load %arg12[%44, %c0_20, %c0_21] : memref<1x1x1xf32, #tpu.memory_space<vmem>>, vector<1x1x1xf32>
    %46 = vector.shape_cast %45 : vector<1x1x1xf32> to vector<1x1xf32>
    %47 = vector.shape_cast %34 : vector<1x1xf32> to vector<1x1x1xf32>
    tpu.vector_store %arg12[%44, %c0_20, %c0_21], %47 {strides = array<i32>} : memref<1x1x1xf32, #tpu.memory_space<vmem>>, vector<1x1x1xf32>,
    %c0_22 = arith.constant 0 : index
    %c0_23 = arith.constant 0 : index
    %48 = vector.load %arg14[%c0_22, %c0_23] : memref<1x1xf32, #tpu.memory_space<vmem>>, vector<1x1xf32>
    %49 = arith.mulf %48, %36 : vector<1x1xf32>
    %cst_24 = arith.constant dense<0.000000e+00> : vector<1xf32>
    %50 = vector.multi_reduction <add>, %39, %cst_24 [1] : vector<1x256xf32> to vector<1xf32>
    %51 = vector.shape_cast %50 : vector<1xf32> to vector<1x1xf32>
    %52 = arith.addf %49, %51 : vector<1x1xf32>
    %c0_25 = arith.constant 0 : index
    %c0_26 = arith.constant 0 : index
    %53 = vector.load %arg14[%c0_25, %c0_26] : memref<1x1xf32, #tpu.memory_space<vmem>>, vector<1x1xf32>
    tpu.vector_store %arg14[%c0_25, %c0_26], %52 {strides = array<i32>} : memref<1x1xf32, #tpu.memory_space<vmem>>, vector<1x1xf32>,
    %c0_27 = arith.constant 0 : index
    %c0_28 = arith.constant 0 : index
    %54 = vector.load %arg15[%c0_27, %c0_28] : memref<1x512xf32, #tpu.memory_space<vmem>>, vector<1x512xf32>
    %55 = vector.broadcast %36 : vector<1x1xf32> to vector<1x512xf32>
    %56 = arith.mulf %54, %55 : vector<1x512xf32>
    %57 = arith.truncf %39 : vector<1x256xf32> to vector<1x256xbf16>
    %cst_29 = arith.constant dense<0.000000e+00> : vector<1x512xf32>
    %58 = tpu.matmul %57, %4, %cst_29 {dimension_numbers = #tpu.dot_dimension_numbers<[1], [0], [0], [1], [0, 0, 1, 1], [], []>} : vector<1x256xbf16>, vector<256x512xbf16>, vector<1x512xf32> -> vector<1x512xf32>
    %59 = arith.addf %56, %58 : vector<1x512xf32>
    %c0_30 = arith.constant 0 : index
    %c0_31 = arith.constant 0 : index
    %60 = vector.load %arg15[%c0_30, %c0_31] : memref<1x512xf32, #tpu.memory_space<vmem>>, vector<1x512xf32>
    tpu.vector_store %arg15[%c0_30, %c0_31], %59 {strides = array<i32>} : memref<1x512xf32, #tpu.memory_space<vmem>>, vector<1x512xf32>,
    %c0_32 = arith.constant 0 : index
    %c0_33 = arith.constant 0 : index
    %61 = vector.load %arg13[%c0_32, %c0_33] : memref<1x1xf32, #tpu.memory_space<vmem>>, vector<1x1xf32>
    tpu.vector_store %arg13[%c0_32, %c0_33], %34 {strides = array<i32>} : memref<1x1xf32, #tpu.memory_space<vmem>>, vector<1x1xf32>,
    %c0_i32_34 = arith.constant 0 : i32
    %62 = arith.cmpi eq, %arg1, %c0_i32_34 : i32
    %63 = arith.extui %62 : i1 to i32
    %c0_i32_35 = arith.constant 0 : i32
    %64 = arith.cmpi ne, %63, %c0_i32_35 : i32
    scf.if %64 {
      %c0_36 = arith.constant 0 : index
      %c0_37 = arith.constant 0 : index
      %65 = vector.load %arg13[%c0_36, %c0_37] : memref<1x1xf32, #tpu.memory_space<vmem>>, vector<1x1xf32>
      %c0_38 = arith.constant 0 : index
      %c0_39 = arith.constant 0 : index
      %66 = vector.load %arg14[%c0_38, %c0_39] : memref<1x1xf32, #tpu.memory_space<vmem>>, vector<1x1xf32>
      %67 = tpu.reciprocal %66 {approx = true} : vector<1x1xf32> -> vector<1x1xf32>
      %68 = arith.mulf %66, %67 : vector<1x1xf32>
      %cst_40 = arith.constant 2.000000e+00 : f32
      %69 = vector.broadcast %cst_40 : f32 to vector<1x1xf32>
      %70 = arith.subf %69, %68 : vector<1x1xf32>
      %71 = arith.mulf %67, %70 : vector<1x1xf32>
      %c0_41 = arith.constant 0 : index
      %c0_42 = arith.constant 0 : index
      %c0_43 = arith.constant 0 : index
      %72 = vector.load %arg12[%c0_41, %c0_42, %c0_43] : memref<1x1x1xf32, #tpu.memory_space<vmem>>, vector<1x1x1xf32>
      %73 = vector.shape_cast %72 : vector<1x1x1xf32> to vector<1x1xf32>
      %74 = arith.subf %73, %65 : vector<1x1xf32>
      %75 = math.exp %74 : vector<1x1xf32>
      %76 = arith.mulf %75, %71 : vector<1x1xf32>
      %c0_44 = arith.constant 0 : index
      %c0_45 = arith.constant 0 : index
      %c0_46 = arith.constant 0 : index
      %77 = vector.load %arg11[%c0_44, %c0_45, %c0_46] : memref<1x1x256xf32, #tpu.memory_space<vmem>>, vector<1x1x256xf32>
      %78 = vector.shape_cast %77 : vector<1x1x256xf32> to vector<1x256xf32>
      %79 = vector.broadcast %76 : vector<1x1xf32> to vector<1x256xf32>
      %80 = arith.mulf %78, %79 : vector<1x256xf32>
      %c0_47 = arith.constant 0 : index
      %c0_48 = arith.constant 0 : index
      %c0_49 = arith.constant 0 : index
      %81 = vector.load %arg9[%c0_47, %c0_48, %c0_49] : memref<1x1x256xf32, #tpu.memory_space<vmem>>, vector<1x1x256xf32>
      %82 = vector.shape_cast %81 : vector<1x1x256xf32> to vector<1x256xf32>
      %83 = vector.shape_cast %80 : vector<1x256xf32> to vector<1x1x256xf32>
      tpu.vector_store %arg9[%c0_47, %c0_48, %c0_49], %83 {strides = array<i32>} : memref<1x1x256xf32, #tpu.memory_space<vmem>>, vector<1x1x256xf32>,
      %c0_50 = arith.constant 0 : index
      %c0_51 = arith.constant 0 : index
      %84 = vector.load %arg15[%c0_50, %c0_51] : memref<1x512xf32, #tpu.memory_space<vmem>>, vector<1x512xf32>
      %85 = vector.broadcast %71 : vector<1x1xf32> to vector<1x512xf32>
      %86 = arith.mulf %84, %85 : vector<1x512xf32>
      %c0_52 = arith.constant 0 : index
      %c0_53 = arith.constant 0 : index
      %c0_54 = arith.constant 0 : index
      %87 = vector.load %arg10[%c0_52, %c0_53, %c0_54] : memref<1x1x512xf32, #tpu.memory_space<vmem>>, vector<1x1x512xf32>
      %88 = vector.shape_cast %87 : vector<1x1x512xf32> to vector<1x512xf32>
      %89 = vector.shape_cast %86 : vector<1x512xf32> to vector<1x1x512xf32>
      tpu.vector_store %arg10[%c0_52, %c0_53, %c0_54], %89 {strides = array<i32>} : memref<1x1x512xf32, #tpu.memory_space<vmem>>, vector<1x1x512xf32>,
    } else {
    }
    return
  }
  func.func @transform_0(%arg0: i32, %arg1: i32, %arg2: memref<2xi32, #tpu.memory_space<smem>>) -> (i32, i32, i32) {
    %c0_i32 = arith.constant 0 : i32
    %c0_i32_0 = arith.constant 0 : i32
    return %arg0, %arg1, %c0_i32 : i32, i32, i32
  }
  func.func @transform_1(%arg0: i32, %arg1: i32, %arg2: memref<2xi32, #tpu.memory_space<smem>>) -> (i32, i32) {
    %c0_i32 = arith.constant 0 : i32
    %c0_i32_0 = arith.constant 0 : i32
    %c0_i32_1 = arith.constant 0 : i32
    return %c0_i32, %c0_i32_0 : i32, i32
  }
  func.func @transform_2(%arg0: i32, %arg1: i32, %arg2: memref<2xi32, #tpu.memory_space<smem>>) -> (i32, i32) {
    %c0_i32 = arith.constant 0 : i32
    %c0_i32_0 = arith.constant 0 : i32
    %c0_i32_1 = arith.constant 0 : i32
    return %c0_i32, %c0_i32_0 : i32, i32
  }
  func.func @transform_3(%arg0: i32, %arg1: i32, %arg2: memref<2xi32, #tpu.memory_space<smem>>) -> i32 {
    %c0_i32 = arith.constant 0 : i32
    %c0_i32_0 = arith.constant 0 : i32
    return %c0_i32 : i32
  }
  func.func @transform_4(%arg0: i32, %arg1: i32, %arg2: memref<2xi32, #tpu.memory_space<smem>>) -> (i32, i32) {
    %c0_i32 = arith.constant 0 : i32
    %c0_i32_0 = arith.constant 0 : i32
    %c0_i32_1 = arith.constant 0 : i32
    return %c0_i32, %c0_i32_0 : i32, i32
  }
  func.func @transform_5(%arg0: i32, %arg1: i32, %arg2: memref<2xi32, #tpu.memory_space<smem>>) -> (i32, i32) {
    %c0_i32 = arith.constant 0 : i32
    %c0_i32_0 = arith.constant 0 : i32
    %c0_i32_1 = arith.constant 0 : i32
    return %c0_i32, %c0_i32_0 : i32, i32
  }
  func.func @transform_6(%arg0: i32, %arg1: i32, %arg2: memref<2xi32, #tpu.memory_space<smem>>) -> (i32, i32, i32) {
    %c0_i32 = arith.constant 0 : i32
    %c0_i32_0 = arith.constant 0 : i32
    %c0_i32_1 = arith.constant 0 : i32
    return %arg0, %c0_i32, %c0_i32_0 : i32, i32, i32
  }
  func.func @transform_7(%arg0: i32, %arg1: i32, %arg2: memref<2xi32, #tpu.memory_space<smem>>) -> (i32, i32, i32) {
    %c0_i32 = arith.constant 0 : i32
    %c0_i32_0 = arith.constant 0 : i32
    %c0_i32_1 = arith.constant 0 : i32
    return %arg0, %c0_i32, %c0_i32_0 : i32, i32, i32
  }
}

</mosaic_0001>

<llo_original>
// kernel: tpu_custom_call.1
$region0: #{tpu_custom_call.1}
  #allocation0 [shape = 'u32[]', space=smem, size = 0x4, offset = 0x4, fixed_abs, tag = 'smem constant byte address 0x4 - core index']
  #allocation1 [shape = 'u32[72,128]{1,0:T(1,128)}', space=vmem, size = 0x9000, scoped, tag = 'internal scratch']
  #allocation2 [shape = 'f32[1,1,256]{2,1,0:T(1,128)}', space=vmem, size = 0x400, scoped, tag = 'scratch operand']
  #allocation3 [shape = 'f32[1,1,1]{2,1,0:T(1,128)}', space=vmem, size = 0x200, scoped, tag = 'scratch operand']
  #allocation4 [shape = 'f32[1,1]{1,0:T(1,128)}', space=vmem, size = 0x200, scoped, tag = 'scratch operand']
  #allocation5 [shape = 'f32[1,1]{1,0:T(1,128)}', space=vmem, size = 0x200, scoped, tag = 'scratch operand']
  #allocation6 [shape = 'f32[1,512]{1,0:T(1,128)}', space=vmem, size = 0x800, scoped, tag = 'scratch operand']
  #allocation7 [shape = 's32[1]{0}', space=sflag, size = 0x4, scoped, tag = 'scoped memory for tpu_custom_call.1']
  #allocation8 [shape = 'u8[512]{0}', space=smem, size = 0x200, scoped, tag = 'prefetched SMEM operand 0']
  #allocation9 [shape = 'f32[1]{0:T(128)S(6)}', space=smem, size = 0x200, scoped, tag = 'scoped memory for tpu_custom_call.1']
  #allocation10 [shape = 'f32[1,1]{1,0:T(1,128)S(1)}', space=vmem, size = 0x200, scoped, tag = 'scoped memory for tpu_custom_call.1']
  %s0 = inlined_call_operand.vmem [shape: s32[2], index: 0, kind: input, shape index: {}]
  %s1 = inlined_call_operand.hbm [shape: bf16[2,256,512], index: 1, kind: input, shape index: {}]
  %s2 = inlined_call_operand.hbm [shape: bf16[512,128], index: 2, kind: input, shape index: {}]
  %s3 = inlined_call_operand.vmem [shape: f32[1,128], index: 3, kind: input, shape index: {}]
  %s4 = inlined_call_operand.<no memory space> [shape: f32[1], index: 4, kind: input, shape index: {}]
  %s5 = inlined_call_operand.vmem [shape: f32[1,128], index: 5, kind: input, shape index: {}]
  %s6 = inlined_call_operand.<no memory space> [shape: f32[1,1], index: 6, kind: input, shape index: {}]
  %s7 = inlined_call_operand.hbm [shape: f32[2,1,256], index: 7, kind: output, shape index: {0}]
  %s8 = inlined_call_operand.hbm [shape: f32[2,1,512], index: 8, kind: output, shape index: {1}]
  %9 = xla_tuple %s7, %s8
  %s10 = sld [smem:[#allocation0]]
  $region81: #{tpu_custom_call.1} parent=0
    _
  %s12 = ssub.s32 1, %s10
  %s13 = scalar_select 0, %s12, %s10
  %s15 = sshll.u32 %s0, 4
  %s16 = int_to_ptr.vmem [resolvable:$true] %s15
  %18 = dma.vmem_to_smem %s16, 16, [#allocation8], [#allocation7]
  %19 = sst [smem:[#allocation9]] %s4
  %v20 = vstv %s6
  %21 = vst [vmem:[#allocation10] sm:$0x1] %v20
  %23 = dma.done [#allocation7], 16
  %24 = sfence
  $region1: #{tpu_custom_call.1} parent=0
    #allocation11 [shape = 'u8[524288]{0}', space=vmem, size = 0x80000, scoped, tag = 'input window, operand 1']
    #allocation12 [shape = 's32[2]{0}', space=sflag, size = 0x8, scoped, tag = 'scoped memory for tpu_custom_call.1']
    #allocation13 [shape = 's32[2]{0}', space=sflag, size = 0x8, scoped, tag = 'scoped memory for tpu_custom_call.1']
    #allocation14 [shape = 'u8[131072]{0}', space=vmem, size = 0x20000, scoped, tag = 'input window, operand 2, single buffered']
    #allocation15 [shape = 's32[1]{0}', space=sflag, size = 0x4, scoped, tag = 'scoped memory for tpu_custom_call.1']
    #allocation16 [shape = 'u8[2048]{0}', space=vmem, size = 0x800, scoped, tag = 'output window, operand 0']
    #allocation17 [shape = 'u8[4096]{0}', space=vmem, size = 0x1000, scoped, tag = 'output window, operand 1']
    #allocation18 [shape = 's32[2]{0}', space=sflag, size = 0x8, scoped, tag = 'scoped memory for tpu_custom_call.1']
    %25 = vsyncpa [#allocation12], 0
    %s26 = scalar_lea.sflag [#allocation12], 1
    %27 = vsyncpa %s26, 0
    %28 = vsyncpa [#allocation15], 0
    %29 = vsyncpa [#allocation13], 0
    %s30 = scalar_lea.sflag [#allocation13], 1
    %31 = vsyncpa %s30, 0
    %32 = vsyncpa [#allocation18], 0
    %s33 = scalar_lea.sflag [#allocation18], 1
    %34 = vsyncpa %s33, 0
    loop: start=0, step=1, limit=4
    $region2: #{tpu_custom_call.1} parent=1 // loop_pre_header
      _
    $region3: #{tpu_custom_call.1} parent=1 // loop_header
      %s36 = sphi 0, %s40
      %p37 = scmp.ge.s32.totalorder %s36, 4
      %s43 = sphi 0, %s55
      %s44 = sphi 0, %s51
      %s45 = sphi 0, %s43
      %s46 = sphi 0, %s44
      %s47 = sphi 0, %s45
      %s48 = sphi 0, %s46
      %s60 = sphi 0, %s62
      %s63 = sphi 0, %s60
      %s64 = sphi 0, %s63
      %s80 = sphi 0, %s64
      %s84 = sphi 0, %s84
      %s86 = sphi 0, %s84
      %s87 = sphi 0, %s86
      %s101 = sphi 0, %s87
      %s105 = sphi 0, %s105
      %s107 = sphi 0, %s105
      %s108 = sphi 0, %s107
      %s122 = sphi 0, %s108
      %s126 = sphi 0, %s126
      %s128 = sphi 0, %s126
      %s129 = sphi 0, %s128
      %s143 = sphi 0, %s129
      %s147 = sphi 0, %s147
      %s149 = sphi 0, %s147
      %s150 = sphi 0, %s149
      %s164 = sphi 0, %s150
      %s168 = sphi 0, %s168
      %s170 = sphi 0, %s168
      %s171 = sphi 0, %s170
      %s185 = sphi 0, %s171
      %s191 = sphi 0, %s193
      %s194 = sphi 0, %s191
      %s195 = sphi 0, %s194
      %s211 = sphi 0, %s195
      %s217 = sphi 0, %s219
      %s220 = sphi 0, %s217
      %s221 = sphi 0, %s220
      %s237 = sphi 0, %s221
    $region4: #{tpu_custom_call.1} parent=1 // loop_header_branch
      %39 = sbr.rel (%p37) target = $region8
    $region5: #{tpu_custom_call.1} parent=1 // loop_body
      %s41 = ssub.s32 %s36, 1
      %s42 = ssub.s32 %s36, 2
      %s49 = sadd.s32 1, %s44
      %p50 = scmp.ge.s32.totalorder %s49, 1
      %s51 = scalar_select %p50, 0, %s49
      %s52 = sadd.s32 1, %s43
      %s53 = scalar_select %p50, %s52, %s43
      %p54 = scmp.ge.s32.totalorder %s53, 2
      %s55 = scalar_select %p54, 0, %s53
      %s56 = ssub.s32 %s43, %s55
      %s57 = ssub.s32 %s44, %s51
      %s58 = sor.u32 %s56, %s57
      %p59 = scmp.eq.s32.totalorder %s58, 0
      %s61 = sadd.s32 %s60, 1
      %s62 = scalar_select %p59, %s60, %s61
      %p65 = pneg %p59
      %p66 = scmp.eq.s32.totalorder %s36, 1
      %p67 = por %p65, %p66
      %p68 = scmp.ne.s32.totalorder %s60, %s63
      %p69 = scmp.eq.s32.totalorder %s36, 0
      %p70 = por %p68, %p69
      %p71 = scmp.ne.s32.totalorder %s60, %s63
      %p72 = scmp.eq.s32.totalorder %s41, 1
      %p73 = por %p71, %p72
      %p74 = scmp.ne.s32.totalorder %s63, %s64
      %p75 = scmp.eq.s32.totalorder %s41, 0
      %p76 = por %p74, %p75
      %p77 = scmp.ne.s32.totalorder %s63, %s64
      %p78 = scmp.eq.s32.totalorder %s42, 1
      %p79 = por %p77, %p78
      %p81 = scmp.ne.s32.totalorder %s64, %s80
      %p82 = scmp.eq.s32.totalorder %s42, 0
      %p83 = por %p81, %p82
      %s85 = sadd.s32 %s84, 1
      %p88 = scmp.eq.s32.totalorder %s36, 1
      %p89 = scmp.ne.s32.totalorder %s84, %s86
      %p90 = scmp.eq.s32.totalorder %s36, 0
      %p91 = por %p89, %p90
      %p92 = scmp.ne.s32.totalorder %s84, %s86
      %p93 = scmp.eq.s32.totalorder %s41, 1
      %p94 = por %p92, %p93
      %p95 = scmp.ne.s32.totalorder %s86, %s87
      %p96 = scmp.eq.s32.totalorder %s41, 0
      %p97 = por %p95, %p96
      %p98 = scmp.ne.s32.totalorder %s86, %s87
      %p99 = scmp.eq.s32.totalorder %s42, 1
      %p100 = por %p98, %p99
      %p102 = scmp.ne.s32.totalorder %s87, %s101
      %p103 = scmp.eq.s32.totalorder %s42, 0
      %p104 = por %p102, %p103
      %s106 = sadd.s32 %s105, 1
      %p109 = scmp.eq.s32.totalorder %s36, 1
      %p110 = scmp.ne.s32.totalorder %s105, %s107
      %p111 = scmp.eq.s32.totalorder %s36, 0
      %p112 = por %p110, %p111
      %p113 = scmp.ne.s32.totalorder %s105, %s107
      %p114 = scmp.eq.s32.totalorder %s41, 1
      %p115 = por %p113, %p114
      %p116 = scmp.ne.s32.totalorder %s107, %s108
      %p117 = scmp.eq.s32.totalorder %s41, 0
      %p118 = por %p116, %p117
      %p119 = scmp.ne.s32.totalorder %s107, %s108
      %p120 = scmp.eq.s32.totalorder %s42, 1
      %p121 = por %p119, %p120
      %p123 = scmp.ne.s32.totalorder %s108, %s122
      %p124 = scmp.eq.s32.totalorder %s42, 0
      %p125 = por %p123, %p124
      %s127 = sadd.s32 %s126, 1
      %p130 = scmp.eq.s32.totalorder %s36, 1
      %p131 = scmp.ne.s32.totalorder %s126, %s128
      %p132 = scmp.eq.s32.totalorder %s36, 0
      %p133 = por %p131, %p132
      %p134 = scmp.ne.s32.totalorder %s126, %s128
      %p135 = scmp.eq.s32.totalorder %s41, 1
      %p136 = por %p134, %p135
      %p137 = scmp.ne.s32.totalorder %s128, %s129
      %p138 = scmp.eq.s32.totalorder %s41, 0
      %p139 = por %p137, %p138
      %p140 = scmp.ne.s32.totalorder %s128, %s129
      %p141 = scmp.eq.s32.totalorder %s42, 1
      %p142 = por %p140, %p141
      %p144 = scmp.ne.s32.totalorder %s129, %s143
      %p145 = scmp.eq.s32.totalorder %s42, 0
      %p146 = por %p144, %p145
      %s148 = sadd.s32 %s147, 1
      %p151 = scmp.eq.s32.totalorder %s36, 1
      %p152 = scmp.ne.s32.totalorder %s147, %s149
      %p153 = scmp.eq.s32.totalorder %s36, 0
      %p154 = por %p152, %p153
      %p155 = scmp.ne.s32.totalorder %s147, %s149
      %p156 = scmp.eq.s32.totalorder %s41, 1
      %p157 = por %p155, %p156
      %p158 = scmp.ne.s32.totalorder %s149, %s150
      %p159 = scmp.eq.s32.totalorder %s41, 0
      %p160 = por %p158, %p159
      %p161 = scmp.ne.s32.totalorder %s149, %s150
      %p162 = scmp.eq.s32.totalorder %s42, 1
      %p163 = por %p161, %p162
      %p165 = scmp.ne.s32.totalorder %s150, %s164
      %p166 = scmp.eq.s32.totalorder %s42, 0
      %p167 = por %p165, %p166
      %s169 = sadd.s32 %s168, 1
      %p172 = scmp.eq.s32.totalorder %s36, 1
      %p173 = scmp.ne.s32.totalorder %s168, %s170
      %p174 = scmp.eq.s32.totalorder %s36, 0
      %p175 = por %p173, %p174
      %p176 = scmp.ne.s32.totalorder %s168, %s170
      %p177 = scmp.eq.s32.totalorder %s41, 1
      %p178 = por %p176, %p177
      %p179 = scmp.ne.s32.totalorder %s170, %s171
      %p180 = scmp.eq.s32.totalorder %s41, 0
      %p181 = por %p179, %p180
      %p182 = scmp.ne.s32.totalorder %s170, %s171
      %p183 = scmp.eq.s32.totalorder %s42, 1
      %p184 = por %p182, %p183
      %p186 = scmp.ne.s32.totalorder %s171, %s185
      %p187 = scmp.eq.s32.totalorder %s42, 0
      %p188 = por %p186, %p187
      %s189 = ssub.s32 %s43, %s55
      %p190 = scmp.eq.s32.totalorder %s189, 0
      %s192 = sadd.s32 %s191, 1
      %s193 = scalar_select %p190, %s191, %s192
      %p196 = pneg %p190
      %p197 = scmp.eq.s32.totalorder %s36, 1
      %p198 = por %p196, %p197
      %p199 = scmp.ne.s32.totalorder %s191, %s194
      %p200 = scmp.eq.s32.totalorder %s36, 0
      %p201 = por %p199, %p200
      %p202 = scmp.ne.s32.totalorder %s191, %s194
      %p203 = scmp.eq.s32.totalorder %s41, 1
      %p204 = por %p202, %p203
      %p205 = scmp.ne.s32.totalorder %s194, %s195
      %p206 = scmp.eq.s32.totalorder %s41, 0
      %p207 = por %p205, %p206
      %p208 = scmp.ne.s32.totalorder %s194, %s195
      %p209 = scmp.eq.s32.totalorder %s42, 1
      %p210 = por %p208, %p209
      %p212 = scmp.ne.s32.totalorder %s195, %s211
      %p213 = scmp.eq.s32.totalorder %s42, 0
      %p214 = por %p212, %p213
      %s215 = ssub.s32 %s43, %s55
      %p216 = scmp.eq.s32.totalorder %s215, 0
      %s218 = sadd.s32 %s217, 1
      %s219 = scalar_select %p216, %s217, %s218
      %p222 = pneg %p216
      %p223 = scmp.eq.s32.totalorder %s36, 1
      %p224 = por %p222, %p223
      %p225 = scmp.ne.s32.totalorder %s217, %s220
      %p226 = scmp.eq.s32.totalorder %s36, 0
      %p227 = por %p225, %p226
      %p228 = scmp.ne.s32.totalorder %s217, %s220
      %p229 = scmp.eq.s32.totalorder %s41, 1
      %p230 = por %p228, %p229
      %p231 = scmp.ne.s32.totalorder %s220, %s221
      %p232 = scmp.eq.s32.totalorder %s41, 0
      %p233 = por %p231, %p232
      %p234 = scmp.ne.s32.totalorder %s220, %s221
      %p235 = scmp.eq.s32.totalorder %s42, 1
      %p236 = por %p234, %p235
      %p238 = scmp.ne.s32.totalorder %s221, %s237
      %p239 = scmp.eq.s32.totalorder %s42, 0
      %p240 = por %p238, %p239
      %p241 = scmp.le.s32.totalorder 1, %s36
      %p242 = scmp.lt.s32.totalorder %s36, 3
      %p243 = pnand %p241, %p242
      %p244 = pneg %p243
      // Predicated region
      $region9: #{tpu_custom_call.1} parent=5 // pred_check
        _
      $region10: #{tpu_custom_call.1} parent=5 // pred_check_branch
        %246 = sbr.rel (%p243) target = $region12
      $region11: #{tpu_custom_call.1} parent=5 // pred_region
        %s247 = ssub.s32 %s36, 1
        // Predicated region
        $region13: #{tpu_custom_call.1} parent=11 // pred_check
          %p248 = pneg %p97
        $region14: #{tpu_custom_call.1} parent=11 // pred_check_branch
          %250 = sbr.rel (%p248) target = $region16
        $region15: #{tpu_custom_call.1} parent=11 // pred_region
          %252 = vsyncadd [#allocation15], 0
          %s253 = sshll.u32 %s2, 4
          %s254 = int_to_ptr.hbm [resolvable:$true] %s253
          %s255 = sshll.u32 [#allocation14], 4
          %s256 = int_to_ptr.vmem [resolvable:$true] %s255
          %261 = dma.hbm_to_vmem [thread:$0]  %s254, 4096, %s256, [#allocation15], 64, 64, 4
        $region16: #{tpu_custom_call.1} parent=11 // pred_fallthru
          _
        // Predicated region
        $region17: #{tpu_custom_call.1} parent=11 // pred_check
          %p262 = pneg %p118
        $region18: #{tpu_custom_call.1} parent=11 // pred_check_branch
          %264 = sbr.rel (%p262) target = $region20
        $region19: #{tpu_custom_call.1} parent=11 // pred_region
          _
        $region20: #{tpu_custom_call.1} parent=11 // pred_fallthru
          _
        // Predicated region
        $region21: #{tpu_custom_call.1} parent=11 // pred_check
          %p265 = pneg %p139
        $region22: #{tpu_custom_call.1} parent=11 // pred_check_branch
          %267 = sbr.rel (%p265) target = $region24
        $region23: #{tpu_custom_call.1} parent=11 // pred_region
          _
        $region24: #{tpu_custom_call.1} parent=11 // pred_fallthru
          _
        // Predicated region
        $region25: #{tpu_custom_call.1} parent=11 // pred_check
          %p268 = pneg %p160
        $region26: #{tpu_custom_call.1} parent=11 // pred_check_branch
          %270 = sbr.rel (%p268) target = $region28
        $region27: #{tpu_custom_call.1} parent=11 // pred_region
          _
        $region28: #{tpu_custom_call.1} parent=11 // pred_fallthru
          _
        // Predicated region
        $region29: #{tpu_custom_call.1} parent=11 // pred_check
          %p271 = pneg %p181
        $region30: #{tpu_custom_call.1} parent=11 // pred_check_branch
          %273 = sbr.rel (%p271) target = $region32
        $region31: #{tpu_custom_call.1} parent=11 // pred_region
          _
        $region32: #{tpu_custom_call.1} parent=11 // pred_fallthru
          _
      $region12: #{tpu_custom_call.1} parent=5 // pred_fallthru
        _
      %p274 = scmp.lt.s32.totalorder %s36, 2
      // Predicated region
      $region33: #{tpu_custom_call.1} parent=5 // pred_check
        %p275 = pneg %p274
      $region34: #{tpu_custom_call.1} parent=5 // pred_check_branch
        %277 = sbr.rel (%p275) target = $region36
      $region35: #{tpu_custom_call.1} parent=5 // pred_region
        // Predicated region
        $region37: #{tpu_custom_call.1} parent=35 // pred_check
          %p278 = pneg %p70
        $region38: #{tpu_custom_call.1} parent=35 // pred_check_branch
          %280 = sbr.rel (%p278) target = $region40
        $region39: #{tpu_custom_call.1} parent=35 // pred_region
          %s281 = sand.u32 %s60, 1
          %s282 = scalar_lea.sflag [#allocation12], %s281
          %s283 = sand.u32 %s60, 1
          %s284 = smul.addr %s283, 512
          %s285 = scalar_lea.vmem [#allocation11], %s284
          %s286 = smul.u32 32, %s44
          %288 = vsyncadd %s282, 0
          %s289 = smul.addr %s286, 4
          %s290 = smul.addr %s43, 128
          %s291 = sadd.s32 %s289, %s290
          %s292 = smul.addr %s291, 4
          %s293 = scalar_lea.hbm %s1, %s292
          %s294 = sshll.u32 %s293, 4
          %s295 = int_to_ptr.hbm [resolvable:$true] %s294
          %s296 = sshll.u32 %s285, 4
          %s297 = int_to_ptr.vmem [resolvable:$true] %s296
          %302 = dma.hbm_to_vmem [thread:$0]  %s295, 8192, %s297, %s282, 256, 256, 16
        $region40: #{tpu_custom_call.1} parent=35 // pred_fallthru
          _
      $region36: #{tpu_custom_call.1} parent=5 // pred_fallthru
        _
      %p303 = scmp.le.s32.totalorder 1, %s36
      %p304 = scmp.lt.s32.totalorder %s36, 3
      %p305 = pnand %p303, %p304
      %p306 = pneg %p305
      // Predicated region
      $region41: #{tpu_custom_call.1} parent=5 // pred_check
        _
      $region42: #{tpu_custom_call.1} parent=5 // pred_check_branch
        %308 = sbr.rel (%p305) target = $region44
      $region43: #{tpu_custom_call.1} parent=5 // pred_region
        %s309 = ssub.s32 %s36, 1
        %s310 = sand.u32 %s63, 1
        %s311 = scalar_lea.sflag [#allocation12], %s310
        %s312 = sand.u32 %s63, 1
        %s313 = smul.addr %s312, 512
        %s314 = scalar_lea.vmem [#allocation11], %s313
        // Predicated region
        $region45: #{tpu_custom_call.1} parent=43 // pred_check
          %p315 = pneg %p76
        $region46: #{tpu_custom_call.1} parent=43 // pred_check_branch
          %317 = sbr.rel (%p315) target = $region48
        $region47: #{tpu_custom_call.1} parent=43 // pred_region
          %319 = dma.done %s311, 8192
        $region48: #{tpu_custom_call.1} parent=43 // pred_fallthru
          _
        // Predicated region
        $region49: #{tpu_custom_call.1} parent=43 // pred_check
          %p320 = pneg %p97
        $region50: #{tpu_custom_call.1} parent=43 // pred_check_branch
          %322 = sbr.rel (%p320) target = $region52
        $region51: #{tpu_custom_call.1} parent=43 // pred_region
          %324 = dma.done [#allocation15], 4096
        $region52: #{tpu_custom_call.1} parent=43 // pred_fallthru
          _
        %s325 = sand.u32 %s63, 1
        %s326 = scalar_lea.sflag [#allocation12], %s325
        %s327 = sand.u32 %s63, 1
        %s328 = smul.addr %s327, 512
        %s329 = scalar_lea.vmem [#allocation11], %s328
        %p330 = pneg %p76
        %p331 = pneg %p73
        %p332 = pneg %p97
        %p333 = pneg %p94
        %p334 = pneg %p118
        %p335 = pneg %p115
        %p336 = pneg %p139
        %p337 = pneg %p136
        %p338 = pneg %p160
        %p339 = pneg %p157
        %p340 = pneg %p181
        %p341 = pneg %p178
        %p342 = pneg %p207
        %p343 = pneg %p204
        %s344 = sand.u32 %s194, 1
        %s345 = scalar_lea.sflag [#allocation13], %s344
        %s346 = sand.u32 %s194, 1
        %s347 = smul.addr %s346, 2
        %s348 = scalar_lea.vmem [#allocation16], %s347
        %p349 = pneg %p233
        %p350 = pneg %p230
        %s351 = sand.u32 %s220, 1
        %s352 = scalar_lea.sflag [#allocation18], %s351
        %s353 = sand.u32 %s220, 1
        %s354 = smul.addr %s353, 4
        %s355 = scalar_lea.vmem [#allocation17], %s354
        %s356 = smul.u32 32, %s46
        %p357 = scmp.eq.s32.totalorder %s46, 0
        // Predicated region
        $region53: #{tpu_custom_call.1} parent=43 // pred_check
          %p358 = pneg %p357
        $region54: #{tpu_custom_call.1} parent=43 // pred_check_branch
          %360 = sbr.rel (%p358) target = $region56
        $region55: #{tpu_custom_call.1} parent=43 // pred_region
          %vm361 = vcmask 0
          %362 = vst.msk [vmem:[#allocation4] sm:$0x1] %vm361, -inf
          %363 = vst.msk [vmem:[#allocation5] sm:$0x1] %vm361, 0.0
          %v364 = vlaneseq
          %vm365 = vcmp.ge.s32.totalorder %v364, 0
          %vm366 = vcmp.lt.s32.totalorder %v364, 512
          %vm367 = vmand %vm365, %vm366
          %368 = vst.msk [vmem:[#allocation6] sm:$0xf] %vm367, 0.0
        $region56: #{tpu_custom_call.1} parent=43 // pred_fallthru
          _
        %v369 = vld [vmem:[%s314] sm:$0xff]
        %v370 = vld [vmem:[%s314 + $0x8] sm:$0xff]
        %v371 = vld [vmem:[%s314 + $0x10] sm:$0xff]
        %v372 = vld [vmem:[%s314 + $0x18] sm:$0xff]
        %v373 = vld [vmem:[%s314 + $0x20] sm:$0xff]
        %v374 = vld [vmem:[%s314 + $0x28] sm:$0xff]
        %v375 = vld [vmem:[%s314 + $0x30] sm:$0xff]
        %v376 = vld [vmem:[%s314 + $0x38] sm:$0xff]
        %v377 = vld [vmem:[%s314 + $0x40] sm:$0xff]
        %v378 = vld [vmem:[%s314 + $0x48] sm:$0xff]
        %v379 = vld [vmem:[%s314 + $0x50] sm:$0xff]
        %v380 = vld [vmem:[%s314 + $0x58] sm:$0xff]
        %v381 = vld [vmem:[%s314 + $0x60] sm:$0xff]
        %v382 = vld [vmem:[%s314 + $0x68] sm:$0xff]
        %v383 = vld [vmem:[%s314 + $0x70] sm:$0xff]
        %v384 = vld [vmem:[%s314 + $0x78] sm:$0xff]
        %v385 = vld [vmem:[%s314 + $0x80] sm:$0xff]
        %v386 = vld [vmem:[%s314 + $0x88] sm:$0xff]
        %v387 = vld [vmem:[%s314 + $0x90] sm:$0xff]
        %v388 = vld [vmem:[%s314 + $0x98] sm:$0xff]
        %v389 = vld [vmem:[%s314 + $0xa0] sm:$0xff]
        %v390 = vld [vmem:[%s314 + $0xa8] sm:$0xff]
        %v391 = vld [vmem:[%s314 + $0xb0] sm:$0xff]
        %v392 = vld [vmem:[%s314 + $0xb8] sm:$0xff]
        %v393 = vld [vmem:[%s314 + $0xc0] sm:$0xff]
        %v394 = vld [vmem:[%s314 + $0xc8] sm:$0xff]
        %v395 = vld [vmem:[%s314 + $0xd0] sm:$0xff]
        %v396 = vld [vmem:[%s314 + $0xd8] sm:$0xff]
        %v397 = vld [vmem:[%s314 + $0xe0] sm:$0xff]
        %v398 = vld [vmem:[%s314 + $0xe8] sm:$0xff]
        %v399 = vld [vmem:[%s314 + $0xf0] sm:$0xff]
        %v400 = vld [vmem:[%s314 + $0xf8] sm:$0xff]
        %v401 = vld [vmem:[%s314 + $0x100] sm:$0xff]
        %v402 = vld [vmem:[%s314 + $0x108] sm:$0xff]
        %v403 = vld [vmem:[%s314 + $0x110] sm:$0xff]
        %v404 = vld [vmem:[%s314 + $0x118] sm:$0xff]
        %v405 = vld [vmem:[%s314 + $0x120] sm:$0xff]
        %v406 = vld [vmem:[%s314 + $0x128] sm:$0xff]
        %v407 = vld [vmem:[%s314 + $0x130] sm:$0xff]
        %v408 = vld [vmem:[%s314 + $0x138] sm:$0xff]
        %v409 = vld [vmem:[%s314 + $0x140] sm:$0xff]
        %v410 = vld [vmem:[%s314 + $0x148] sm:$0xff]
        %v411 = vld [vmem:[%s314 + $0x150] sm:$0xff]
        %v412 = vld [vmem:[%s314 + $0x158] sm:$0xff]
        %v413 = vld [vmem:[%s314 + $0x160] sm:$0xff]
        %v414 = vld [vmem:[%s314 + $0x168] sm:$0xff]
        %v415 = vld [vmem:[%s314 + $0x170] sm:$0xff]
        %v416 = vld [vmem:[%s314 + $0x178] sm:$0xff]
        %v417 = vld [vmem:[%s314 + $0x180] sm:$0xff]
        %v418 = vld [vmem:[%s314 + $0x188] sm:$0xff]
        %v419 = vld [vmem:[%s314 + $0x190] sm:$0xff]
        %v420 = vld [vmem:[%s314 + $0x198] sm:$0xff]
        %v421 = vld [vmem:[%s314 + $0x1a0] sm:$0xff]
        %v422 = vld [vmem:[%s314 + $0x1a8] sm:$0xff]
        %v423 = vld [vmem:[%s314 + $0x1b0] sm:$0xff]
        %v424 = vld [vmem:[%s314 + $0x1b8] sm:$0xff]
        %v425 = vld [vmem:[%s314 + $0x1c0] sm:$0xff]
        %v426 = vld [vmem:[%s314 + $0x1c8] sm:$0xff]
        %v427 = vld [vmem:[%s314 + $0x1d0] sm:$0xff]
        %v428 = vld [vmem:[%s314 + $0x1d8] sm:$0xff]
        %v429 = vld [vmem:[%s314 + $0x1e0] sm:$0xff]
        %v430 = vld [vmem:[%s314 + $0x1e8] sm:$0xff]
        %v431 = vld [vmem:[%s314 + $0x1f0] sm:$0xff]
        %v432 = vld [vmem:[%s314 + $0x1f8] sm:$0xff]
        %v433 = vld [vmem:[#allocation14] sm:$0xf]
        %v434 = vld [vmem:[#allocation14 + $0x4] sm:$0xf]
        %v435 = vld [vmem:[#allocation14 + $0x8] sm:$0xf]
        %v436 = vld [vmem:[#allocation14 + $0xc] sm:$0xf]
        %v437 = vld [vmem:[#allocation14 + $0x10] sm:$0xf]
        %v438 = vld [vmem:[#allocation14 + $0x14] sm:$0xf]
        %v439 = vld [vmem:[#allocation14 + $0x18] sm:$0xf]
        %v440 = vld [vmem:[#allocation14 + $0x1c] sm:$0xf]
        %v441 = vld [vmem:[#allocation14 + $0x20] sm:$0xf]
        %v442 = vld [vmem:[#allocation14 + $0x24] sm:$0xf]
        %v443 = vld [vmem:[#allocation14 + $0x28] sm:$0xf]
        %v444 = vld [vmem:[#allocation14 + $0x2c] sm:$0xf]
        %v445 = vld [vmem:[#allocation14 + $0x30] sm:$0xf]
        %v446 = vld [vmem:[#allocation14 + $0x34] sm:$0xf]
        %v447 = vld [vmem:[#allocation14 + $0x38] sm:$0xf]
        %v448 = vld [vmem:[#allocation14 + $0x3c] sm:$0xf]
        %v449 = vld [vmem:[#allocation14 + $0x40] sm:$0xf]
        %v450 = vld [vmem:[#allocation14 + $0x44] sm:$0xf]
        %v451 = vld [vmem:[#allocation14 + $0x48] sm:$0xf]
        %v452 = vld [vmem:[#allocation14 + $0x4c] sm:$0xf]
        %v453 = vld [vmem:[#allocation14 + $0x50] sm:$0xf]
        %v454 = vld [vmem:[#allocation14 + $0x54] sm:$0xf]
        %v455 = vld [vmem:[#allocation14 + $0x58] sm:$0xf]
        %v456 = vld [vmem:[#allocation14 + $0x5c] sm:$0xf]
        %v457 = vld [vmem:[#allocation14 + $0x60] sm:$0xf]
        %v458 = vld [vmem:[#allocation14 + $0x64] sm:$0xf]
        %v459 = vld [vmem:[#allocation14 + $0x68] sm:$0xf]
        %v460 = vld [vmem:[#allocation14 + $0x6c] sm:$0xf]
        %v461 = vld [vmem:[#allocation14 + $0x70] sm:$0xf]
        %v462 = vld [vmem:[#allocation14 + $0x74] sm:$0xf]
        %v463 = vld [vmem:[#allocation14 + $0x78] sm:$0xf]
        %v464 = vld [vmem:[#allocation14 + $0x7c] sm:$0xf]
        %v465 = vld [vmem:[#allocation14 + $0x80] sm:$0xf]
        %v466 = vld [vmem:[#allocation14 + $0x84] sm:$0xf]
        %v467 = vld [vmem:[#allocation14 + $0x88] sm:$0xf]
        %v468 = vld [vmem:[#allocation14 + $0x8c] sm:$0xf]
        %v469 = vld [vmem:[#allocation14 + $0x90] sm:$0xf]
        %v470 = vld [vmem:[#allocation14 + $0x94] sm:$0xf]
        %v471 = vld [vmem:[#allocation14 + $0x98] sm:$0xf]
        %v472 = vld [vmem:[#allocation14 + $0x9c] sm:$0xf]
        %v473 = vld [vmem:[#allocation14 + $0xa0] sm:$0xf]
        %v474 = vld [vmem:[#allocation14 + $0xa4] sm:$0xf]
        %v475 = vld [vmem:[#allocation14 + $0xa8] sm:$0xf]
        %v476 = vld [vmem:[#allocation14 + $0xac] sm:$0xf]
        %v477 = vld [vmem:[#allocation14 + $0xb0] sm:$0xf]
        %v478 = vld [vmem:[#allocation14 + $0xb4] sm:$0xf]
        %v479 = vld [vmem:[#allocation14 + $0xb8] sm:$0xf]
        %v480 = vld [vmem:[#allocation14 + $0xbc] sm:$0xf]
        %v481 = vld [vmem:[#allocation14 + $0xc0] sm:$0xf]
        %v482 = vld [vmem:[#allocation14 + $0xc4] sm:$0xf]
        %v483 = vld [vmem:[#allocation14 + $0xc8] sm:$0xf]
        %v484 = vld [vmem:[#allocation14 + $0xcc] sm:$0xf]
        %v485 = vld [vmem:[#allocation14 + $0xd0] sm:$0xf]
        %v486 = vld [vmem:[#allocation14 + $0xd4] sm:$0xf]
        %v487 = vld [vmem:[#allocation14 + $0xd8] sm:$0xf]
        %v488 = vld [vmem:[#allocation14 + $0xdc] sm:$0xf]
        %v489 = vld [vmem:[#allocation14 + $0xe0] sm:$0xf]
        %v490 = vld [vmem:[#allocation14 + $0xe4] sm:$0xf]
        %v491 = vld [vmem:[#allocation14 + $0xe8] sm:$0xf]
        %v492 = vld [vmem:[#allocation14 + $0xec] sm:$0xf]
        %v493 = vld [vmem:[#allocation14 + $0xf0] sm:$0xf]
        %v494 = vld [vmem:[#allocation14 + $0xf4] sm:$0xf]
        %v495 = vld [vmem:[#allocation14 + $0xf8] sm:$0xf]
        %v496 = vld [vmem:[#allocation14 + $0xfc] sm:$0xf]
        %v497 = vld [vmem:[%s3] sm:$0x1]
        %v499 = vperm.slane %v497, 0
        %v565 = vunpack.c.l.b16 %v369
        %v566 = vunpack.c.h.b16 %v369
        %v567 = vunpack.c.l.b16 %v370
        %v568 = vunpack.c.h.b16 %v370
        %v569 = vunpack.c.l.b16 %v371
        %v570 = vunpack.c.h.b16 %v371
        %v571 = vunpack.c.l.b16 %v372
        %v572 = vunpack.c.h.b16 %v372
        %v573 = vunpack.c.l.b16 %v373
        %v574 = vunpack.c.h.b16 %v373
        %v575 = vunpack.c.l.b16 %v374
        %v576 = vunpack.c.h.b16 %v374
        %v577 = vunpack.c.l.b16 %v375
        %v578 = vunpack.c.h.b16 %v375
        %v579 = vunpack.c.l.b16 %v376
        %v580 = vunpack.c.h.b16 %v376
        %v581 = vunpack.c.l.b16 %v377
        %v582 = vunpack.c.h.b16 %v377
        %v583 = vunpack.c.l.b16 %v378
        %v584 = vunpack.c.h.b16 %v378
        %v585 = vunpack.c.l.b16 %v379
        %v586 = vunpack.c.h.b16 %v379
        %v587 = vunpack.c.l.b16 %v380
        %v588 = vunpack.c.h.b16 %v380
        %v589 = vunpack.c.l.b16 %v381
        %v590 = vunpack.c.h.b16 %v381
        %v591 = vunpack.c.l.b16 %v382
        %v592 = vunpack.c.h.b16 %v382
        %v593 = vunpack.c.l.b16 %v383
        %v594 = vunpack.c.h.b16 %v383
        %v595 = vunpack.c.l.b16 %v384
        %v596 = vunpack.c.h.b16 %v384
        %v597 = vunpack.c.l.b16 %v385
        %v598 = vunpack.c.h.b16 %v385
        %v599 = vunpack.c.l.b16 %v386
        %v600 = vunpack.c.h.b16 %v386
        %v601 = vunpack.c.l.b16 %v387
        %v602 = vunpack.c.h.b16 %v387
        %v603 = vunpack.c.l.b16 %v388
        %v604 = vunpack.c.h.b16 %v388
        %v605 = vunpack.c.l.b16 %v389
        %v606 = vunpack.c.h.b16 %v389
        %v607 = vunpack.c.l.b16 %v390
        %v608 = vunpack.c.h.b16 %v390
        %v609 = vunpack.c.l.b16 %v391
        %v610 = vunpack.c.h.b16 %v391
        %v611 = vunpack.c.l.b16 %v392
        %v612 = vunpack.c.h.b16 %v392
        %v613 = vunpack.c.l.b16 %v393
        %v614 = vunpack.c.h.b16 %v393
        %v615 = vunpack.c.l.b16 %v394
        %v616 = vunpack.c.h.b16 %v394
        %v617 = vunpack.c.l.b16 %v395
        %v618 = vunpack.c.h.b16 %v395
        %v619 = vunpack.c.l.b16 %v396
        %v620 = vunpack.c.h.b16 %v396
        %v621 = vunpack.c.l.b16 %v397
        %v622 = vunpack.c.h.b16 %v397
        %v623 = vunpack.c.l.b16 %v398
        %v624 = vunpack.c.h.b16 %v398
        %v625 = vunpack.c.l.b16 %v399
        %v626 = vunpack.c.h.b16 %v399
        %v627 = vunpack.c.l.b16 %v400
        %v628 = vunpack.c.h.b16 %v400
        %v629 = vunpack.c.l.b16 %v401
        %v630 = vunpack.c.h.b16 %v401
        %v631 = vunpack.c.l.b16 %v402
        %v632 = vunpack.c.h.b16 %v402
        %v633 = vunpack.c.l.b16 %v403
        %v634 = vunpack.c.h.b16 %v403
        %v635 = vunpack.c.l.b16 %v404
        %v636 = vunpack.c.h.b16 %v404
        %v637 = vunpack.c.l.b16 %v405
        %v638 = vunpack.c.h.b16 %v405
        %v639 = vunpack.c.l.b16 %v406
        %v640 = vunpack.c.h.b16 %v406
        %v641 = vunpack.c.l.b16 %v407
        %v642 = vunpack.c.h.b16 %v407
        %v643 = vunpack.c.l.b16 %v408
        %v644 = vunpack.c.h.b16 %v408
        %v645 = vunpack.c.l.b16 %v409
        %v646 = vunpack.c.h.b16 %v409
        %v647 = vunpack.c.l.b16 %v410
        %v648 = vunpack.c.h.b16 %v410
        %v649 = vunpack.c.l.b16 %v411
        %v650 = vunpack.c.h.b16 %v411
        %v651 = vunpack.c.l.b16 %v412
        %v652 = vunpack.c.h.b16 %v412
        %v653 = vunpack.c.l.b16 %v413
        %v654 = vunpack.c.h.b16 %v413
        %v655 = vunpack.c.l.b16 %v414
        %v656 = vunpack.c.h.b16 %v414
        %v657 = vunpack.c.l.b16 %v415
        %v658 = vunpack.c.h.b16 %v415
        %v659 = vunpack.c.l.b16 %v416
        %v660 = vunpack.c.h.b16 %v416
        %v661 = vunpack.c.l.b16 %v417
        %v662 = vunpack.c.h.b16 %v417
        %v663 = vunpack.c.l.b16 %v418
        %v664 = vunpack.c.h.b16 %v418
        %v665 = vunpack.c.l.b16 %v419
        %v666 = vunpack.c.h.b16 %v419
        %v667 = vunpack.c.l.b16 %v420
        %v668 = vunpack.c.h.b16 %v420
        %v669 = vunpack.c.l.b16 %v421
        %v670 = vunpack.c.h.b16 %v421
        %v671 = vunpack.c.l.b16 %v422
        %v672 = vunpack.c.h.b16 %v422
        %v673 = vunpack.c.l.b16 %v423
        %v674 = vunpack.c.h.b16 %v423
        %v675 = vunpack.c.l.b16 %v424
        %v676 = vunpack.c.h.b16 %v424
        %v677 = vunpack.c.l.b16 %v425
        %v678 = vunpack.c.h.b16 %v425
        %v679 = vunpack.c.l.b16 %v426
        %v680 = vunpack.c.h.b16 %v426
        %v681 = vunpack.c.l.b16 %v427
        %v682 = vunpack.c.h.b16 %v427
        %v683 = vunpack.c.l.b16 %v428
        %v684 = vunpack.c.h.b16 %v428
        %v685 = vunpack.c.l.b16 %v429
        %v686 = vunpack.c.h.b16 %v429
        %v687 = vunpack.c.l.b16 %v430
        %v688 = vunpack.c.h.b16 %v430
        %v689 = vunpack.c.l.b16 %v431
        %v690 = vunpack.c.h.b16 %v431
        %v691 = vunpack.c.l.b16 %v432
        %v692 = vunpack.c.h.b16 %v432
        %v693 = vpack.c.b16 %v569, %v565
        %v694 = vpack.c.b16 %v570, %v566
        %v695 = vpack.c.b16 %v571, %v567
        %v696 = vpack.c.b16 %v572, %v568
        %v697 = vpack.c.b16 %v577, %v573
        %v698 = vpack.c.b16 %v578, %v574
        %v699 = vpack.c.b16 %v579, %v575
        %v700 = vpack.c.b16 %v580, %v576
        %v701 = vpack.c.b16 %v585, %v581
        %v702 = vpack.c.b16 %v586, %v582
        %v703 = vpack.c.b16 %v587, %v583
        %v704 = vpack.c.b16 %v588, %v584
        %v705 = vpack.c.b16 %v593, %v589
        %v706 = vpack.c.b16 %v594, %v590
        %v707 = vpack.c.b16 %v595, %v591
        %v708 = vpack.c.b16 %v596, %v592
        %v709 = vpack.c.b16 %v601, %v597
        %v710 = vpack.c.b16 %v602, %v598
        %v711 = vpack.c.b16 %v603, %v599
        %v712 = vpack.c.b16 %v604, %v600
        %v713 = vpack.c.b16 %v609, %v605
        %v714 = vpack.c.b16 %v610, %v606
        %v715 = vpack.c.b16 %v611, %v607
        %v716 = vpack.c.b16 %v612, %v608
        %v717 = vpack.c.b16 %v617, %v613
        %v718 = vpack.c.b16 %v618, %v614
        %v719 = vpack.c.b16 %v619, %v615
        %v720 = vpack.c.b16 %v620, %v616
        %v721 = vpack.c.b16 %v625, %v621
        %v722 = vpack.c.b16 %v626, %v622
        %v723 = vpack.c.b16 %v627, %v623
        %v724 = vpack.c.b16 %v628, %v624
        %v725 = vpack.c.b16 %v633, %v629
        %v726 = vpack.c.b16 %v634, %v630
        %v727 = vpack.c.b16 %v635, %v631
        %v728 = vpack.c.b16 %v636, %v632
        %v729 = vpack.c.b16 %v641, %v637
        %v730 = vpack.c.b16 %v642, %v638
        %v731 = vpack.c.b16 %v643, %v639
        %v732 = vpack.c.b16 %v644, %v640
        %v733 = vpack.c.b16 %v649, %v645
        %v734 = vpack.c.b16 %v650, %v646
        %v735 = vpack.c.b16 %v651, %v647
        %v736 = vpack.c.b16 %v652, %v648
        %v737 = vpack.c.b16 %v657, %v653
        %v738 = vpack.c.b16 %v658, %v654
        %v739 = vpack.c.b16 %v659, %v655
        %v740 = vpack.c.b16 %v660, %v656
        %v741 = vpack.c.b16 %v665, %v661
        %v742 = vpack.c.b16 %v666, %v662
        %v743 = vpack.c.b16 %v667, %v663
        %v744 = vpack.c.b16 %v668, %v664
        %v745 = vpack.c.b16 %v673, %v669
        %v746 = vpack.c.b16 %v674, %v670
        %v747 = vpack.c.b16 %v675, %v671
        %v748 = vpack.c.b16 %v676, %v672
        %v749 = vpack.c.b16 %v681, %v677
        %v750 = vpack.c.b16 %v682, %v678
        %v751 = vpack.c.b16 %v683, %v679
        %v752 = vpack.c.b16 %v684, %v680
        %v753 = vpack.c.b16 %v689, %v685
        %v754 = vpack.c.b16 %v690, %v686
        %v755 = vpack.c.b16 %v691, %v687
        %v756 = vpack.c.b16 %v692, %v688
        %v885 = vunpack.c.l.b16 %v433
        %v886 = vunpack.c.l.b16 %v434
        %v887 = vunpack.c.l.b16 %v435
        %v888 = vunpack.c.l.b16 %v436
        %v889 = vunpack.c.l.b16 %v437
        %v890 = vunpack.c.l.b16 %v438
        %v891 = vunpack.c.l.b16 %v439
        %v892 = vunpack.c.l.b16 %v440
        %v893 = vunpack.c.l.b16 %v441
        %v894 = vunpack.c.l.b16 %v442
        %v895 = vunpack.c.l.b16 %v443
        %v896 = vunpack.c.l.b16 %v444
        %v897 = vunpack.c.l.b16 %v445
        %v898 = vunpack.c.l.b16 %v446
        %v899 = vunpack.c.l.b16 %v447
        %v900 = vunpack.c.l.b16 %v448
        %v901 = vunpack.c.l.b16 %v449
        %v902 = vunpack.c.l.b16 %v450
        %v903 = vunpack.c.l.b16 %v451
        %v904 = vunpack.c.l.b16 %v452
        %v905 = vunpack.c.l.b16 %v453
        %v906 = vunpack.c.l.b16 %v454
        %v907 = vunpack.c.l.b16 %v455
        %v908 = vunpack.c.l.b16 %v456
        %v909 = vunpack.c.l.b16 %v457
        %v910 = vunpack.c.l.b16 %v458
        %v911 = vunpack.c.l.b16 %v459
        %v912 = vunpack.c.l.b16 %v460
        %v913 = vunpack.c.l.b16 %v461
        %v914 = vunpack.c.l.b16 %v462
        %v915 = vunpack.c.l.b16 %v463
        %v916 = vunpack.c.l.b16 %v464
        %v917 = vunpack.c.l.b16 %v465
        %v918 = vunpack.c.l.b16 %v466
        %v919 = vunpack.c.l.b16 %v467
        %v920 = vunpack.c.l.b16 %v468
        %v921 = vunpack.c.l.b16 %v469
        %v922 = vunpack.c.l.b16 %v470
        %v923 = vunpack.c.l.b16 %v471
        %v924 = vunpack.c.l.b16 %v472
        %v925 = vunpack.c.l.b16 %v473
        %v926 = vunpack.c.l.b16 %v474
        %v927 = vunpack.c.l.b16 %v475
        %v928 = vunpack.c.l.b16 %v476
        %v929 = vunpack.c.l.b16 %v477
        %v930 = vunpack.c.l.b16 %v478
        %v931 = vunpack.c.l.b16 %v479
        %v932 = vunpack.c.l.b16 %v480
        %v933 = vunpack.c.l.b16 %v481
        %v934 = vunpack.c.l.b16 %v482
        %v935 = vunpack.c.l.b16 %v483
        %v936 = vunpack.c.l.b16 %v484
        %v937 = vunpack.c.l.b16 %v485
        %v938 = vunpack.c.l.b16 %v486
        %v939 = vunpack.c.l.b16 %v487
        %v940 = vunpack.c.l.b16 %v488
        %v941 = vunpack.c.l.b16 %v489
        %v942 = vunpack.c.l.b16 %v490
        %v943 = vunpack.c.l.b16 %v491
        %v944 = vunpack.c.l.b16 %v492
        %v945 = vunpack.c.l.b16 %v493
        %v946 = vunpack.c.l.b16 %v494
        %v947 = vunpack.c.l.b16 %v495
        %v948 = vunpack.c.l.b16 %v496
        %v949 = vpack.c.b16 %v886, %v885
        %v950 = vpack.c.b16 %v888, %v887
        %v951 = vpack.c.b16 %v890, %v889
        %v952 = vpack.c.b16 %v892, %v891
        %v953 = vpack.c.b16 %v894, %v893
        %v954 = vpack.c.b16 %v896, %v895
        %v955 = vpack.c.b16 %v898, %v897
        %v956 = vpack.c.b16 %v900, %v899
        %v957 = vpack.c.b16 %v902, %v901
        %v958 = vpack.c.b16 %v904, %v903
        %v959 = vpack.c.b16 %v906, %v905
        %v960 = vpack.c.b16 %v908, %v907
        %v961 = vpack.c.b16 %v910, %v909
        %v962 = vpack.c.b16 %v912, %v911
        %v963 = vpack.c.b16 %v914, %v913
        %v964 = vpack.c.b16 %v916, %v915
        %v965 = vpack.c.b16 %v918, %v917
        %v966 = vpack.c.b16 %v920, %v919
        %v967 = vpack.c.b16 %v922, %v921
        %v968 = vpack.c.b16 %v924, %v923
        %v969 = vpack.c.b16 %v926, %v925
        %v970 = vpack.c.b16 %v928, %v927
        %v971 = vpack.c.b16 %v930, %v929
        %v972 = vpack.c.b16 %v932, %v931
        %v973 = vpack.c.b16 %v934, %v933
        %v974 = vpack.c.b16 %v936, %v935
        %v975 = vpack.c.b16 %v938, %v937
        %v976 = vpack.c.b16 %v940, %v939
        %v977 = vpack.c.b16 %v942, %v941
        %v978 = vpack.c.b16 %v944, %v943
        %v979 = vpack.c.b16 %v946, %v945
        %v980 = vpack.c.b16 %v948, %v947
        %1013 = vmatpush.bf16.msra.mxu0 %v956
        %1014 = vmatpush.bf16.msra.mxu0 %v955
        %1015 = vmatpush.bf16.msra.mxu0 %v954
        %1016 = vmatpush.bf16.msra.mxu0 %v953
        %1017 = vmatpush.bf16.msra.mxu0 %v952
        %1018 = vmatpush.bf16.msra.mxu0 %v951
        %1019 = vmatpush.bf16.msra.mxu0 %v950
        %1020 = vmatpush.bf16.msra.mxu0 %v949
        %1021 = vmatmul.bf16.gmra.mxu0 %v693
        %v1022 = vpop.f32.mrf.mxu0
        %v1023 = vadd.f32 %v499, %v1022
        %v1024 = vpop.f32.mrf.mxu0
        %v1025 = vadd.f32 %v499, %v1024
        %1026 = vmatmul.bf16.gmra.mxu0 %v697
        %v1027 = vpop.f32.mrf.mxu0
        %v1028 = vadd.f32 %v499, %v1027
        %v1029 = vpop.f32.mrf.mxu0
        %v1030 = vadd.f32 %v499, %v1029
        %1031 = vmatmul.bf16.gmra.mxu0 %v701
        %v1032 = vpop.f32.mrf.mxu0
        %v1033 = vadd.f32 %v499, %v1032
        %v1034 = vpop.f32.mrf.mxu0
        %v1035 = vadd.f32 %v499, %v1034
        %1036 = vmatmul.bf16.gmra.mxu0 %v705
        %v1037 = vpop.f32.mrf.mxu0
        %v1038 = vadd.f32 %v499, %v1037
        %v1039 = vpop.f32.mrf.mxu0
        %v1040 = vadd.f32 %v499, %v1039
        %1041 = vmatmul.bf16.gmra.mxu0 %v709
        %v1042 = vpop.f32.mrf.mxu0
        %v1043 = vadd.f32 %v499, %v1042
        %v1044 = vpop.f32.mrf.mxu0
        %v1045 = vadd.f32 %v499, %v1044
        %1046 = vmatmul.bf16.gmra.mxu0 %v713
        %v1047 = vpop.f32.mrf.mxu0
        %v1048 = vadd.f32 %v499, %v1047
        %v1049 = vpop.f32.mrf.mxu0
        %v1050 = vadd.f32 %v499, %v1049
        %1051 = vmatmul.bf16.gmra.mxu0 %v717
        %v1052 = vpop.f32.mrf.mxu0
        %v1053 = vadd.f32 %v499, %v1052
        %v1054 = vpop.f32.mrf.mxu0
        %v1055 = vadd.f32 %v499, %v1054
        %1056 = vmatmul.bf16.gmra.mxu0 %v721
        %v1057 = vpop.f32.mrf.mxu0
        %v1058 = vadd.f32 %v499, %v1057
        %v1059 = vpop.f32.mrf.mxu0
        %v1060 = vadd.f32 %v499, %v1059
        %1061 = vmatmul.bf16.gmra.mxu0 %v725
        %v1062 = vpop.f32.mrf.mxu0
        %v1063 = vadd.f32 %v499, %v1062
        %v1064 = vpop.f32.mrf.mxu0
        %v1065 = vadd.f32 %v499, %v1064
        %1066 = vmatmul.bf16.gmra.mxu0 %v729
        %v1067 = vpop.f32.mrf.mxu0
        %v1068 = vadd.f32 %v499, %v1067
        %v1069 = vpop.f32.mrf.mxu0
        %v1070 = vadd.f32 %v499, %v1069
        %1071 = vmatmul.bf16.gmra.mxu0 %v733
        %v1072 = vpop.f32.mrf.mxu0
        %v1073 = vadd.f32 %v499, %v1072
        %v1074 = vpop.f32.mrf.mxu0
        %v1075 = vadd.f32 %v499, %v1074
        %1076 = vmatmul.bf16.gmra.mxu0 %v737
        %v1077 = vpop.f32.mrf.mxu0
        %v1078 = vadd.f32 %v499, %v1077
        %v1079 = vpop.f32.mrf.mxu0
        %v1080 = vadd.f32 %v499, %v1079
        %1081 = vmatmul.bf16.gmra.mxu0 %v741
        %v1082 = vpop.f32.mrf.mxu0
        %v1083 = vadd.f32 %v499, %v1082
        %v1084 = vpop.f32.mrf.mxu0
        %v1085 = vadd.f32 %v499, %v1084
        %1086 = vmatmul.bf16.gmra.mxu0 %v745
        %v1087 = vpop.f32.mrf.mxu0
        %v1088 = vadd.f32 %v499, %v1087
        %v1089 = vpop.f32.mrf.mxu0
        %v1090 = vadd.f32 %v499, %v1089
        %1091 = vmatmul.bf16.gmra.mxu0 %v749
        %v1092 = vpop.f32.mrf.mxu0
        %v1093 = vadd.f32 %v499, %v1092
        %v1094 = vpop.f32.mrf.mxu0
        %v1095 = vadd.f32 %v499, %v1094
        %1096 = vmatmul.bf16.gmra.mxu0 %v753
        %v1097 = vpop.f32.mrf.mxu0
        %v1098 = vadd.f32 %v499, %v1097
        %v1099 = vpop.f32.mrf.mxu0
        %v1100 = vadd.f32 %v499, %v1099
        %1101 = vdwg.mxu0
        %1102 = vmatpush.bf16.msra.mxu0 %v964
        %1103 = vmatpush.bf16.msra.mxu0 %v963
        %1104 = vmatpush.bf16.msra.mxu0 %v962
        %1105 = vmatpush.bf16.msra.mxu0 %v961
        %1106 = vmatpush.bf16.msra.mxu0 %v960
        %1107 = vmatpush.bf16.msra.mxu0 %v959
        %1108 = vmatpush.bf16.msra.mxu0 %v958
        %1109 = vmatpush.bf16.msra.mxu0 %v957
        %1110 = vmatmul.bf16.gmra.mxu0 %v694
        %v1111 = vpop.f32.mrf.mxu0
        %v1112 = vadd.f32 %v1023, %v1111
        %v1113 = vpop.f32.mrf.mxu0
        %v1114 = vadd.f32 %v1025, %v1113
        %1115 = vmatmul.bf16.gmra.mxu0 %v698
        %v1116 = vpop.f32.mrf.mxu0
        %v1117 = vadd.f32 %v1028, %v1116
        %v1118 = vpop.f32.mrf.mxu0
        %v1119 = vadd.f32 %v1030, %v1118
        %1120 = vmatmul.bf16.gmra.mxu0 %v702
        %v1121 = vpop.f32.mrf.mxu0
        %v1122 = vadd.f32 %v1033, %v1121
        %v1123 = vpop.f32.mrf.mxu0
        %v1124 = vadd.f32 %v1035, %v1123
        %1125 = vmatmul.bf16.gmra.mxu0 %v706
        %v1126 = vpop.f32.mrf.mxu0
        %v1127 = vadd.f32 %v1038, %v1126
        %v1128 = vpop.f32.mrf.mxu0
        %v1129 = vadd.f32 %v1040, %v1128
        %1130 = vmatmul.bf16.gmra.mxu0 %v710
        %v1131 = vpop.f32.mrf.mxu0
        %v1132 = vadd.f32 %v1043, %v1131
        %v1133 = vpop.f32.mrf.mxu0
        %v1134 = vadd.f32 %v1045, %v1133
        %1135 = vmatmul.bf16.gmra.mxu0 %v714
        %v1136 = vpop.f32.mrf.mxu0
        %v1137 = vadd.f32 %v1048, %v1136
        %v1138 = vpop.f32.mrf.mxu0
        %v1139 = vadd.f32 %v1050, %v1138
        %1140 = vmatmul.bf16.gmra.mxu0 %v718
        %v1141 = vpop.f32.mrf.mxu0
        %v1142 = vadd.f32 %v1053, %v1141
        %v1143 = vpop.f32.mrf.mxu0
        %v1144 = vadd.f32 %v1055, %v1143
        %1145 = vmatmul.bf16.gmra.mxu0 %v722
        %v1146 = vpop.f32.mrf.mxu0
        %v1147 = vadd.f32 %v1058, %v1146
        %v1148 = vpop.f32.mrf.mxu0
        %v1149 = vadd.f32 %v1060, %v1148
        %1150 = vmatmul.bf16.gmra.mxu0 %v726
        %v1151 = vpop.f32.mrf.mxu0
        %v1152 = vadd.f32 %v1063, %v1151
        %v1153 = vpop.f32.mrf.mxu0
        %v1154 = vadd.f32 %v1065, %v1153
        %1155 = vmatmul.bf16.gmra.mxu0 %v730
        %v1156 = vpop.f32.mrf.mxu0
        %v1157 = vadd.f32 %v1068, %v1156
        %v1158 = vpop.f32.mrf.mxu0
        %v1159 = vadd.f32 %v1070, %v1158
        %1160 = vmatmul.bf16.gmra.mxu0 %v734
        %v1161 = vpop.f32.mrf.mxu0
        %v1162 = vadd.f32 %v1073, %v1161
        %v1163 = vpop.f32.mrf.mxu0
        %v1164 = vadd.f32 %v1075, %v1163
        %1165 = vmatmul.bf16.gmra.mxu0 %v738
        %v1166 = vpop.f32.mrf.mxu0
        %v1167 = vadd.f32 %v1078, %v1166
        %v1168 = vpop.f32.mrf.mxu0
        %v1169 = vadd.f32 %v1080, %v1168
        %1170 = vmatmul.bf16.gmra.mxu0 %v742
        %v1171 = vpop.f32.mrf.mxu0
        %v1172 = vadd.f32 %v1083, %v1171
        %v1173 = vpop.f32.mrf.mxu0
        %v1174 = vadd.f32 %v1085, %v1173
        %1175 = vmatmul.bf16.gmra.mxu0 %v746
        %v1176 = vpop.f32.mrf.mxu0
        %v1177 = vadd.f32 %v1088, %v1176
        %v1178 = vpop.f32.mrf.mxu0
        %v1179 = vadd.f32 %v1090, %v1178
        %1180 = vmatmul.bf16.gmra.mxu0 %v750
        %v1181 = vpop.f32.mrf.mxu0
        %v1182 = vadd.f32 %v1093, %v1181
        %v1183 = vpop.f32.mrf.mxu0
        %v1184 = vadd.f32 %v1095, %v1183
        %1185 = vmatmul.bf16.gmra.mxu0 %v754
        %v1186 = vpop.f32.mrf.mxu0
        %v1187 = vadd.f32 %v1098, %v1186
        %v1188 = vpop.f32.mrf.mxu0
        %v1189 = vadd.f32 %v1100, %v1188
        %1190 = vdwg.mxu0
        %1191 = vmatpush.bf16.msra.mxu0 %v972
        %1192 = vmatpush.bf16.msra.mxu0 %v971
        %1193 = vmatpush.bf16.msra.mxu0 %v970
        %1194 = vmatpush.bf16.msra.mxu0 %v969
        %1195 = vmatpush.bf16.msra.mxu0 %v968
        %1196 = vmatpush.bf16.msra.mxu0 %v967
        %1197 = vmatpush.bf16.msra.mxu0 %v966
        %1198 = vmatpush.bf16.msra.mxu0 %v965
        %1199 = vmatmul.bf16.gmra.mxu0 %v695
        %v1200 = vpop.f32.mrf.mxu0
        %v1201 = vadd.f32 %v1112, %v1200
        %v1202 = vpop.f32.mrf.mxu0
        %v1203 = vadd.f32 %v1114, %v1202
        %1204 = vmatmul.bf16.gmra.mxu0 %v699
        %v1205 = vpop.f32.mrf.mxu0
        %v1206 = vadd.f32 %v1117, %v1205
        %v1207 = vpop.f32.mrf.mxu0
        %v1208 = vadd.f32 %v1119, %v1207
        %1209 = vmatmul.bf16.gmra.mxu0 %v703
        %v1210 = vpop.f32.mrf.mxu0
        %v1211 = vadd.f32 %v1122, %v1210
        %v1212 = vpop.f32.mrf.mxu0
        %v1213 = vadd.f32 %v1124, %v1212
        %1214 = vmatmul.bf16.gmra.mxu0 %v707
        %v1215 = vpop.f32.mrf.mxu0
        %v1216 = vadd.f32 %v1127, %v1215
        %v1217 = vpop.f32.mrf.mxu0
        %v1218 = vadd.f32 %v1129, %v1217
        %1219 = vmatmul.bf16.gmra.mxu0 %v711
        %v1220 = vpop.f32.mrf.mxu0
        %v1221 = vadd.f32 %v1132, %v1220
        %v1222 = vpop.f32.mrf.mxu0
        %v1223 = vadd.f32 %v1134, %v1222
        %1224 = vmatmul.bf16.gmra.mxu0 %v715
        %v1225 = vpop.f32.mrf.mxu0
        %v1226 = vadd.f32 %v1137, %v1225
        %v1227 = vpop.f32.mrf.mxu0
        %v1228 = vadd.f32 %v1139, %v1227
        %1229 = vmatmul.bf16.gmra.mxu0 %v719
        %v1230 = vpop.f32.mrf.mxu0
        %v1231 = vadd.f32 %v1142, %v1230
        %v1232 = vpop.f32.mrf.mxu0
        %v1233 = vadd.f32 %v1144, %v1232
        %1234 = vmatmul.bf16.gmra.mxu0 %v723
        %v1235 = vpop.f32.mrf.mxu0
        %v1236 = vadd.f32 %v1147, %v1235
        %v1237 = vpop.f32.mrf.mxu0
        %v1238 = vadd.f32 %v1149, %v1237
        %1239 = vmatmul.bf16.gmra.mxu0 %v727
        %v1240 = vpop.f32.mrf.mxu0
        %v1241 = vadd.f32 %v1152, %v1240
        %v1242 = vpop.f32.mrf.mxu0
        %v1243 = vadd.f32 %v1154, %v1242
        %1244 = vmatmul.bf16.gmra.mxu0 %v731
        %v1245 = vpop.f32.mrf.mxu0
        %v1246 = vadd.f32 %v1157, %v1245
        %v1247 = vpop.f32.mrf.mxu0
        %v1248 = vadd.f32 %v1159, %v1247
        %1249 = vmatmul.bf16.gmra.mxu0 %v735
        %v1250 = vpop.f32.mrf.mxu0
        %v1251 = vadd.f32 %v1162, %v1250
        %v1252 = vpop.f32.mrf.mxu0
        %v1253 = vadd.f32 %v1164, %v1252
        %1254 = vmatmul.bf16.gmra.mxu0 %v739
        %v1255 = vpop.f32.mrf.mxu0
        %v1256 = vadd.f32 %v1167, %v1255
        %v1257 = vpop.f32.mrf.mxu0
        %v1258 = vadd.f32 %v1169, %v1257
        %1259 = vmatmul.bf16.gmra.mxu0 %v743
        %v1260 = vpop.f32.mrf.mxu0
        %v1261 = vadd.f32 %v1172, %v1260
        %v1262 = vpop.f32.mrf.mxu0
        %v1263 = vadd.f32 %v1174, %v1262
        %1264 = vmatmul.bf16.gmra.mxu0 %v747
        %v1265 = vpop.f32.mrf.mxu0
        %v1266 = vadd.f32 %v1177, %v1265
        %v1267 = vpop.f32.mrf.mxu0
        %v1268 = vadd.f32 %v1179, %v1267
        %1269 = vmatmul.bf16.gmra.mxu0 %v751
        %v1270 = vpop.f32.mrf.mxu0
        %v1271 = vadd.f32 %v1182, %v1270
        %v1272 = vpop.f32.mrf.mxu0
        %v1273 = vadd.f32 %v1184, %v1272
        %1274 = vmatmul.bf16.gmra.mxu0 %v755
        %v1275 = vpop.f32.mrf.mxu0
        %v1276 = vadd.f32 %v1187, %v1275
        %v1277 = vpop.f32.mrf.mxu0
        %v1278 = vadd.f32 %v1189, %v1277
        %1279 = vdwg.mxu0
        %1280 = vmatpush.bf16.msra.mxu0 %v980
        %1281 = vmatpush.bf16.msra.mxu0 %v979
        %1282 = vmatpush.bf16.msra.mxu0 %v978
        %1283 = vmatpush.bf16.msra.mxu0 %v977
        %1284 = vmatpush.bf16.msra.mxu0 %v976
        %1285 = vmatpush.bf16.msra.mxu0 %v975
        %1286 = vmatpush.bf16.msra.mxu0 %v974
        %1287 = vmatpush.bf16.msra.mxu0 %v973
        %1288 = vmatmul.bf16.gmra.mxu0 %v696
        %v1289 = vpop.f32.mrf.mxu0
        %v1290 = vadd.f32 %v1201, %v1289
        %v1291 = vpop.f32.mrf.mxu0
        %v1292 = vadd.f32 %v1203, %v1291
        %1293 = vmatmul.bf16.gmra.mxu0 %v700
        %v1294 = vpop.f32.mrf.mxu0
        %v1295 = vadd.f32 %v1206, %v1294
        %v1296 = vpop.f32.mrf.mxu0
        %v1297 = vadd.f32 %v1208, %v1296
        %1298 = vmatmul.bf16.gmra.mxu0 %v704
        %v1299 = vpop.f32.mrf.mxu0
        %v1300 = vadd.f32 %v1211, %v1299
        %v1301 = vpop.f32.mrf.mxu0
        %v1302 = vadd.f32 %v1213, %v1301
        %1303 = vmatmul.bf16.gmra.mxu0 %v708
        %v1304 = vpop.f32.mrf.mxu0
        %v1305 = vadd.f32 %v1216, %v1304
        %v1306 = vpop.f32.mrf.mxu0
        %v1307 = vadd.f32 %v1218, %v1306
        %1308 = vmatmul.bf16.gmra.mxu0 %v712
        %v1309 = vpop.f32.mrf.mxu0
        %v1310 = vadd.f32 %v1221, %v1309
        %v1311 = vpop.f32.mrf.mxu0
        %v1312 = vadd.f32 %v1223, %v1311
        %1313 = vmatmul.bf16.gmra.mxu0 %v716
        %v1314 = vpop.f32.mrf.mxu0
        %v1315 = vadd.f32 %v1226, %v1314
        %v1316 = vpop.f32.mrf.mxu0
        %v1317 = vadd.f32 %v1228, %v1316
        %1318 = vmatmul.bf16.gmra.mxu0 %v720
        %v1319 = vpop.f32.mrf.mxu0
        %v1320 = vadd.f32 %v1231, %v1319
        %v1321 = vpop.f32.mrf.mxu0
        %v1322 = vadd.f32 %v1233, %v1321
        %1323 = vmatmul.bf16.gmra.mxu0 %v724
        %v1324 = vpop.f32.mrf.mxu0
        %v1325 = vadd.f32 %v1236, %v1324
        %v1326 = vpop.f32.mrf.mxu0
        %v1327 = vadd.f32 %v1238, %v1326
        %1328 = vmatmul.bf16.gmra.mxu0 %v728
        %v1329 = vpop.f32.mrf.mxu0
        %v1330 = vadd.f32 %v1241, %v1329
        %v1331 = vpop.f32.mrf.mxu0
        %v1332 = vadd.f32 %v1243, %v1331
        %1333 = vmatmul.bf16.gmra.mxu0 %v732
        %v1334 = vpop.f32.mrf.mxu0
        %v1335 = vadd.f32 %v1246, %v1334
        %v1336 = vpop.f32.mrf.mxu0
        %v1337 = vadd.f32 %v1248, %v1336
        %1338 = vmatmul.bf16.gmra.mxu0 %v736
        %v1339 = vpop.f32.mrf.mxu0
        %v1340 = vadd.f32 %v1251, %v1339
        %v1341 = vpop.f32.mrf.mxu0
        %v1342 = vadd.f32 %v1253, %v1341
        %1343 = vmatmul.bf16.gmra.mxu0 %v740
        %v1344 = vpop.f32.mrf.mxu0
        %v1345 = vadd.f32 %v1256, %v1344
        %v1346 = vpop.f32.mrf.mxu0
        %v1347 = vadd.f32 %v1258, %v1346
        %1348 = vmatmul.bf16.gmra.mxu0 %v744
        %v1349 = vpop.f32.mrf.mxu0
        %v1350 = vadd.f32 %v1261, %v1349
        %v1351 = vpop.f32.mrf.mxu0
        %v1352 = vadd.f32 %v1263, %v1351
        %1353 = vmatmul.bf16.gmra.mxu0 %v748
        %v1354 = vpop.f32.mrf.mxu0
        %v1355 = vadd.f32 %v1266, %v1354
        %v1356 = vpop.f32.mrf.mxu0
        %v1357 = vadd.f32 %v1268, %v1356
        %1358 = vmatmul.bf16.gmra.mxu0 %v752
        %v1359 = vpop.f32.mrf.mxu0
        %v1360 = vadd.f32 %v1271, %v1359
        %v1361 = vpop.f32.mrf.mxu0
        %v1362 = vadd.f32 %v1273, %v1361
        %1363 = vmatmul.bf16.gmra.mxu0 %v756
        %v1364 = vpop.f32.mrf.mxu0
        %v1365 = vadd.f32 %v1276, %v1364
        %v1366 = vpop.f32.mrf.mxu0
        %v1367 = vadd.f32 %v1278, %v1366
        %1368 = vdwg.mxu0
        %s1369 = sld [smem:[#allocation9]]
        %vm1370 = vcmp.gt.f32.partialorder %v1290, 0.0
        %vm1371 = vcmp.gt.f32.partialorder %v1292, 0.0
        %vm1372 = vcmp.gt.f32.partialorder %v1295, 0.0
        %vm1373 = vcmp.gt.f32.partialorder %v1297, 0.0
        %vm1374 = vcmp.gt.f32.partialorder %v1300, 0.0
        %vm1375 = vcmp.gt.f32.partialorder %v1302, 0.0
        %vm1376 = vcmp.gt.f32.partialorder %v1305, 0.0
        %vm1377 = vcmp.gt.f32.partialorder %v1307, 0.0
        %vm1378 = vcmp.gt.f32.partialorder %v1310, 0.0
        %vm1379 = vcmp.gt.f32.partialorder %v1312, 0.0
        %vm1380 = vcmp.gt.f32.partialorder %v1315, 0.0
        %vm1381 = vcmp.gt.f32.partialorder %v1317, 0.0
        %vm1382 = vcmp.gt.f32.partialorder %v1320, 0.0
        %vm1383 = vcmp.gt.f32.partialorder %v1322, 0.0
        %vm1384 = vcmp.gt.f32.partialorder %v1325, 0.0
        %vm1385 = vcmp.gt.f32.partialorder %v1327, 0.0
        %vm1386 = vcmp.gt.f32.partialorder %v1330, 0.0
        %vm1387 = vcmp.gt.f32.partialorder %v1332, 0.0
        %vm1388 = vcmp.gt.f32.partialorder %v1335, 0.0
        %vm1389 = vcmp.gt.f32.partialorder %v1337, 0.0
        %vm1390 = vcmp.gt.f32.partialorder %v1340, 0.0
        %vm1391 = vcmp.gt.f32.partialorder %v1342, 0.0
        %vm1392 = vcmp.gt.f32.partialorder %v1345, 0.0
        %vm1393 = vcmp.gt.f32.partialorder %v1347, 0.0
        %vm1394 = vcmp.gt.f32.partialorder %v1350, 0.0
        %vm1395 = vcmp.gt.f32.partialorder %v1352, 0.0
        %vm1396 = vcmp.gt.f32.partialorder %v1355, 0.0
        %vm1397 = vcmp.gt.f32.partialorder %v1357, 0.0
        %vm1398 = vcmp.gt.f32.partialorder %v1360, 0.0
        %vm1399 = vcmp.gt.f32.partialorder %v1362, 0.0
        %vm1400 = vcmp.gt.f32.partialorder %v1365, 0.0
        %vm1401 = vcmp.gt.f32.partialorder %v1367, 0.0
        %v1402 = vstv %s1369
        %v1403 = vmul.f32 %v1402, %v1290
        %v1404 = vmul.f32 %v1402, %v1292
        %v1405 = vmul.f32 %v1402, %v1295
        %v1406 = vmul.f32 %v1402, %v1297
        %v1407 = vmul.f32 %v1402, %v1300
        %v1408 = vmul.f32 %v1402, %v1302
        %v1409 = vmul.f32 %v1402, %v1305
        %v1410 = vmul.f32 %v1402, %v1307
        %v1411 = vmul.f32 %v1402, %v1310
        %v1412 = vmul.f32 %v1402, %v1312
        %v1413 = vmul.f32 %v1402, %v1315
        %v1414 = vmul.f32 %v1402, %v1317
        %v1415 = vmul.f32 %v1402, %v1320
        %v1416 = vmul.f32 %v1402, %v1322
        %v1417 = vmul.f32 %v1402, %v1325
        %v1418 = vmul.f32 %v1402, %v1327
        %v1419 = vmul.f32 %v1402, %v1330
        %v1420 = vmul.f32 %v1402, %v1332
        %v1421 = vmul.f32 %v1402, %v1335
        %v1422 = vmul.f32 %v1402, %v1337
        %v1423 = vmul.f32 %v1402, %v1340
        %v1424 = vmul.f32 %v1402, %v1342
        %v1425 = vmul.f32 %v1402, %v1345
        %v1426 = vmul.f32 %v1402, %v1347
        %v1427 = vmul.f32 %v1402, %v1350
        %v1428 = vmul.f32 %v1402, %v1352
        %v1429 = vmul.f32 %v1402, %v1355
        %v1430 = vmul.f32 %v1402, %v1357
        %v1431 = vmul.f32 %v1402, %v1360
        %v1432 = vmul.f32 %v1402, %v1362
        %v1433 = vmul.f32 %v1402, %v1365
        %v1434 = vmul.f32 %v1402, %v1367
        %v1435 = vsel %vm1370, %v1290, %v1403
        %v1436 = vsel %vm1371, %v1292, %v1404
        %v1437 = vsel %vm1372, %v1295, %v1405
        %v1438 = vsel %vm1373, %v1297, %v1406
        %v1439 = vsel %vm1374, %v1300, %v1407
        %v1440 = vsel %vm1375, %v1302, %v1408
        %v1441 = vsel %vm1376, %v1305, %v1409
        %v1442 = vsel %vm1377, %v1307, %v1410
        %v1443 = vsel %vm1378, %v1310, %v1411
        %v1444 = vsel %vm1379, %v1312, %v1412
        %v1445 = vsel %vm1380, %v1315, %v1413
        %v1446 = vsel %vm1381, %v1317, %v1414
        %v1447 = vsel %vm1382, %v1320, %v1415
        %v1448 = vsel %vm1383, %v1322, %v1416
        %v1449 = vsel %vm1384, %v1325, %v1417
        %v1450 = vsel %vm1385, %v1327, %v1418
        %v1451 = vsel %vm1386, %v1330, %v1419
        %v1452 = vsel %vm1387, %v1332, %v1420
        %v1453 = vsel %vm1388, %v1335, %v1421
        %v1454 = vsel %vm1389, %v1337, %v1422
        %v1455 = vsel %vm1390, %v1340, %v1423
        %v1456 = vsel %vm1391, %v1342, %v1424
        %v1457 = vsel %vm1392, %v1345, %v1425
        %v1458 = vsel %vm1393, %v1347, %v1426
        %v1459 = vsel %vm1394, %v1350, %v1427
        %v1460 = vsel %vm1395, %v1352, %v1428
        %v1461 = vsel %vm1396, %v1355, %v1429
        %v1462 = vsel %vm1397, %v1357, %v1430
        %v1463 = vsel %vm1398, %v1360, %v1431
        %v1464 = vsel %vm1399, %v1362, %v1432
        %v1465 = vsel %vm1400, %v1365, %v1433
        %v1466 = vsel %vm1401, %v1367, %v1434
        %v1467 = vld [vmem:[%s5] sm:$0x1]
        %v1468 = vld [vmem:[#allocation10] sm:$0x1]
        %1470 = vset.pattern.permute.xlu0 0
        %1471 = vperm.xlu0 %1470, %v1468
        %v1472 = vpop.permute.xlu0 %1471
        %v1474 = vperm.slane %v1472, 0
        %1475 = vmatpush.xpose.msra.mxu0 %v1450
        %1476 = vmatpush.xpose.msra.mxu0 %v1449
        %1477 = vmatpush.xpose.msra.mxu0 %v1448
        %1478 = vmatpush.xpose.msra.mxu0 %v1447
        %1479 = vmatpush.xpose.msra.mxu0 %v1446
        %1480 = vmatpush.xpose.msra.mxu0 %v1445
        %1481 = vmatpush.xpose.msra.mxu0 %v1444
        %1482 = vmatpush.xpose.msra.mxu0 %v1443
        %1483 = vmatpush.xpose.msra.mxu0 %v1442
        %1484 = vmatpush.xpose.msra.mxu0 %v1441
        %1485 = vmatpush.xpose.msra.mxu0 %v1440
        %1486 = vmatpush.xpose.msra.mxu0 %v1439
        %1487 = vmatpush.xpose.msra.mxu0 %v1438
        %1488 = vmatpush.xpose.msra.mxu0 %v1437
        %1489 = vmatpush.xpose.msra.mxu0 %v1436
        %1490 = vmatpush.xpose.msra.mxu0 %v1435
        %1491 = vmatmul.f32.gmra.mxu0 %v1467
        %v1492 = vpop.f32.mrf.mxu0
        %v1493 = vadd.f32 %v1474, %v1492
        %1494 = vdwg.mxu0
        %1495 = vmatpush.xpose.msra.mxu0 %v1466
        %1496 = vmatpush.xpose.msra.mxu0 %v1465
        %1497 = vmatpush.xpose.msra.mxu0 %v1464
        %1498 = vmatpush.xpose.msra.mxu0 %v1463
        %1499 = vmatpush.xpose.msra.mxu0 %v1462
        %1500 = vmatpush.xpose.msra.mxu0 %v1461
        %1501 = vmatpush.xpose.msra.mxu0 %v1460
        %1502 = vmatpush.xpose.msra.mxu0 %v1459
        %1503 = vmatpush.xpose.msra.mxu0 %v1458
        %1504 = vmatpush.xpose.msra.mxu0 %v1457
        %1505 = vmatpush.xpose.msra.mxu0 %v1456
        %1506 = vmatpush.xpose.msra.mxu0 %v1455
        %1507 = vmatpush.xpose.msra.mxu0 %v1454
        %1508 = vmatpush.xpose.msra.mxu0 %v1453
        %1509 = vmatpush.xpose.msra.mxu0 %v1452
        %1510 = vmatpush.xpose.msra.mxu0 %v1451
        %1511 = vmatmul.f32.gmra.mxu0 %v1467
        %v1512 = vpop.f32.mrf.mxu0
        %v1513 = vadd.f32 %v1474, %v1512
        %1514 = vdwg.mxu0
        %s1515 = smul.u32 %s46, 256
        %v1516 = vlaneseq
        %v1517 = vand.u32 %v1516, 127
        %v1518 = vadd.s32 %v1517, 128
        %v1519 = vstv %s1515
        %v1520 = vadd.s32 %v1519, %v1517
        %v1521 = vadd.s32 %v1519, %v1518
        %s1522 = sld [smem:[#allocation8 + %s45]]
        %v1523 = vstv %s1522
        %vm1524 = vcmp.lt.s32.totalorder %v1520, %v1523
        %vm1525 = vcmp.lt.s32.totalorder %v1521, %v1523
        %v1526 = vsel %vm1524, %v1493, -inf
        %v1527 = vsel %vm1525, %v1513, -inf
        %v1528 = vld [vmem:[#allocation4] sm:$0x1]
        %vm1529 = vcmask 1040384
        %v1530 = vsel %vm1529, %v1526, -inf
        %v1531 = vsel %vm1529, %v1527, -inf
        %v1532 = vmax.f32 %v1530, %v1531
        %1533 = vmax.xlane.f32.xlu0 %v1532
        %v1534 = vpop.xlane.xlu0 %1533
        %v1535 = vmax.f32 %v1528, %v1534
        %v1536 = vsub.f32 %v1528, %v1535
        %v1537 = vmul.f32 %v1536, 1.442695
        %v1538 = vpow.pop %v1537
        %1540 = vset.pattern.permute.xlu0 0
        %1541 = vperm.xlu0 %1540, %v1535
        %v1542 = vpop.permute.xlu0 %1541
        %v1544 = vperm.slane %v1542, 0
        %v1545 = vsub.f32 %v1526, %v1544
        %v1546 = vsub.f32 %v1527, %v1544
        %v1547 = vmul.f32 %v1545, 1.442695
        %v1548 = vpow.pop %v1547
        %v1549 = vmul.f32 %v1546, 1.442695
        %v1550 = vpow.pop %v1549
        %v1553 = vrot.slane %v1550, 7
        %v1554 = vsel %vm1529, %v1548, %v1553
        %s1556 = smul.u32 %s46, 2
        %s1557 = scalar_lea.vmem [#allocation2], %s1556
        %v1558 = vlaneseq
        %vm1559 = vcmp.ge.s32.totalorder %v1558, 0
        %vm1560 = vcmp.lt.s32.totalorder %v1558, 256
        %vm1561 = vmand %vm1559, %vm1560
        %1562 = vst.msk [vmem:[%s1557] sm:$0x3] %vm1561, %v1554
        %s1563 = scalar_lea.vmem [#allocation3], %s46
        %vm1564 = vcmask 0
        %1565 = vst.msk [vmem:[%s1563] sm:$0x1] %vm1564, %v1535
        %v1566 = vld [vmem:[#allocation5] sm:$0x1]
        %v1567 = vmul.f32 %v1566, %v1538
        %v1568 = vsel %vm1529, %v1548, 0.0
        %v1569 = vsel %vm1529, %v1550, 0.0
        %v1570 = vadd.f32 %v1568, %v1569
        %1571 = vadd.xlane.f32.xlu0 %v1570
        %v1572 = vpop.xlane.xlu0 %1571
        %v1573 = vadd.f32 %v1567, %v1572
        %1574 = vst.msk [vmem:[#allocation5] sm:$0x1] %vm1564, %v1573
        %v1575 = vld [vmem:[#allocation6] sm:$0xf]
        %1577 = vset.pattern.permute.xlu0 0
        %1578 = vperm.xlu0 %1577, %v1538
        %v1579 = vpop.permute.xlu0 %1578
        %v1581 = vperm.slane %v1579, 0
        %v1582 = vmul.f32 %v1575, %v1581
        %v1583 = vpack.c.bf16 %v1548, %v1548
        %v1584 = vpack.c.bf16 %v1550, %v1550
        %1585 = vmatpush.bf16.msra.mxu0 %v721
        %1586 = vmatpush.bf16.msra.mxu0 %v717
        %1587 = vmatpush.bf16.msra.mxu0 %v713
        %1588 = vmatpush.bf16.msra.mxu0 %v709
        %1589 = vmatpush.bf16.msra.mxu0 %v705
        %1590 = vmatpush.bf16.msra.mxu0 %v701
        %1591 = vmatpush.bf16.msra.mxu0 %v697
        %1592 = vmatpush.bf16.msra.mxu0 %v693
        %1593 = vmatmul.bf16.gmra.mxu0 %v1583
        %v1594 = vpop.f32.mrf.mxu0
        %v1595 = vadd.f32 0.0, %v1594
        %v1596 = vpop.f32.mrf.mxu0
        %1597 = vdwg.mxu0
        %1598 = vmatpush.bf16.msra.mxu0 %v753
        %1599 = vmatpush.bf16.msra.mxu0 %v749
        %1600 = vmatpush.bf16.msra.mxu0 %v745
        %1601 = vmatpush.bf16.msra.mxu0 %v741
        %1602 = vmatpush.bf16.msra.mxu0 %v737
        %1603 = vmatpush.bf16.msra.mxu0 %v733
        %1604 = vmatpush.bf16.msra.mxu0 %v729
        %1605 = vmatpush.bf16.msra.mxu0 %v725
        %1606 = vmatmul.bf16.gmra.mxu0 %v1584
        %v1607 = vpop.f32.mrf.mxu0
        %v1608 = vadd.f32 %v1595, %v1607
        %v1609 = vpop.f32.mrf.mxu0
        %1610 = vdwg.mxu0
        %1611 = vmatpush.bf16.msra.mxu0 %v722
        %1612 = vmatpush.bf16.msra.mxu0 %v718
        %1613 = vmatpush.bf16.msra.mxu0 %v714
        %1614 = vmatpush.bf16.msra.mxu0 %v710
        %1615 = vmatpush.bf16.msra.mxu0 %v706
        %1616 = vmatpush.bf16.msra.mxu0 %v702
        %1617 = vmatpush.bf16.msra.mxu0 %v698
        %1618 = vmatpush.bf16.msra.mxu0 %v694
        %1619 = vmatmul.bf16.gmra.mxu0 %v1583
        %v1620 = vpop.f32.mrf.mxu0
        %v1621 = vadd.f32 0.0, %v1620
        %v1622 = vpop.f32.mrf.mxu0
        %1623 = vdwg.mxu0
        %1624 = vmatpush.bf16.msra.mxu0 %v754
        %1625 = vmatpush.bf16.msra.mxu0 %v750
        %1626 = vmatpush.bf16.msra.mxu0 %v746
        %1627 = vmatpush.bf16.msra.mxu0 %v742
        %1628 = vmatpush.bf16.msra.mxu0 %v738
        %1629 = vmatpush.bf16.msra.mxu0 %v734
        %1630 = vmatpush.bf16.msra.mxu0 %v730
        %1631 = vmatpush.bf16.msra.mxu0 %v726
        %1632 = vmatmul.bf16.gmra.mxu0 %v1584
        %v1633 = vpop.f32.mrf.mxu0
        %v1634 = vadd.f32 %v1621, %v1633
        %v1635 = vpop.f32.mrf.mxu0
        %1636 = vdwg.mxu0
        %1637 = vmatpush.bf16.msra.mxu0 %v723
        %1638 = vmatpush.bf16.msra.mxu0 %v719
        %1639 = vmatpush.bf16.msra.mxu0 %v715
        %1640 = vmatpush.bf16.msra.mxu0 %v711
        %1641 = vmatpush.bf16.msra.mxu0 %v707
        %1642 = vmatpush.bf16.msra.mxu0 %v703
        %1643 = vmatpush.bf16.msra.mxu0 %v699
        %1644 = vmatpush.bf16.msra.mxu0 %v695
        %1645 = vmatmul.bf16.gmra.mxu0 %v1583
        %v1646 = vpop.f32.mrf.mxu0
        %v1647 = vadd.f32 0.0, %v1646
        %v1648 = vpop.f32.mrf.mxu0
        %1649 = vdwg.mxu0
        %1650 = vmatpush.bf16.msra.mxu0 %v755
        %1651 = vmatpush.bf16.msra.mxu0 %v751
        %1652 = vmatpush.bf16.msra.mxu0 %v747
        %1653 = vmatpush.bf16.msra.mxu0 %v743
        %1654 = vmatpush.bf16.msra.mxu0 %v739
        %1655 = vmatpush.bf16.msra.mxu0 %v735
        %1656 = vmatpush.bf16.msra.mxu0 %v731
        %1657 = vmatpush.bf16.msra.mxu0 %v727
        %1658 = vmatmul.bf16.gmra.mxu0 %v1584
        %v1659 = vpop.f32.mrf.mxu0
        %v1660 = vadd.f32 %v1647, %v1659
        %v1661 = vpop.f32.mrf.mxu0
        %1662 = vdwg.mxu0
        %1663 = vmatpush.bf16.msra.mxu0 %v724
        %1664 = vmatpush.bf16.msra.mxu0 %v720
        %1665 = vmatpush.bf16.msra.mxu0 %v716
        %1666 = vmatpush.bf16.msra.mxu0 %v712
        %1667 = vmatpush.bf16.msra.mxu0 %v708
        %1668 = vmatpush.bf16.msra.mxu0 %v704
        %1669 = vmatpush.bf16.msra.mxu0 %v700
        %1670 = vmatpush.bf16.msra.mxu0 %v696
        %1671 = vmatmul.bf16.gmra.mxu0 %v1583
        %v1672 = vpop.f32.mrf.mxu0
        %v1673 = vadd.f32 0.0, %v1672
        %v1674 = vpop.f32.mrf.mxu0
        %1675 = vdwg.mxu0
        %1676 = vmatpush.bf16.msra.mxu0 %v756
        %1677 = vmatpush.bf16.msra.mxu0 %v752
        %1678 = vmatpush.bf16.msra.mxu0 %v748
        %1679 = vmatpush.bf16.msra.mxu0 %v744
        %1680 = vmatpush.bf16.msra.mxu0 %v740
        %1681 = vmatpush.bf16.msra.mxu0 %v736
        %1682 = vmatpush.bf16.msra.mxu0 %v732
        %1683 = vmatpush.bf16.msra.mxu0 %v728
        %1684 = vmatmul.bf16.gmra.mxu0 %v1584
        %v1685 = vpop.f32.mrf.mxu0
        %v1686 = vadd.f32 %v1673, %v1685
        %v1687 = vpop.f32.mrf.mxu0
        %1688 = vdwg.mxu0
        %v1693 = vrot.slane %v1634, 7
        %v1694 = vrot.slane %v1660, 6
        %v1695 = vrot.slane %v1686, 5
        %v1696 = vsel %vm1529, %v1608, %v1693
        %vm1697 = vcmask 1042434
        %v1698 = vsel %vm1697, %v1694, %v1695
        %vm1699 = vcmask 1041408
        %v1700 = vsel %vm1699, %v1696, %v1698
        %v1702 = vadd.f32 %v1582, %v1700
        %vm1703 = vcmp.lt.s32.totalorder %v1558, 512
        %vm1704 = vmand %vm1559, %vm1703
        %1705 = vst.msk [vmem:[#allocation6] sm:$0xf] %vm1704, %v1702
        %1706 = vst.msk [vmem:[#allocation4] sm:$0x1] %vm1564, %v1535
        // Predicated region
        $region57: #{tpu_custom_call.1} parent=43 // pred_check
          %p1707 = pneg %p357
        $region58: #{tpu_custom_call.1} parent=43 // pred_check_branch
          %1709 = sbr.rel (%p1707) target = $region60
        $region59: #{tpu_custom_call.1} parent=43 // pred_region
          %v1710 = vld [vmem:[#allocation4] sm:$0x1]
          %v1711 = vld [vmem:[#allocation5] sm:$0x1]
          %v1712 = vrcp.pop %v1711
          %v1713 = vmul.f32 %v1711, %v1712
          %v1714 = vsub.f32 2.0, %v1713
          %v1715 = vmul.f32 %v1712, %v1714
          %v1716 = vld [vmem:[#allocation3] sm:$0x1]
          %v1717 = vsub.f32 %v1716, %v1710
          %v1718 = vmul.f32 %v1717, 1.442695
          %v1719 = vpow.pop %v1718
          %v1720 = vmul.f32 %v1719, %v1715
          %v1721 = vld [vmem:[#allocation2] sm:$0x3]
          %1723 = vset.pattern.permute.xlu0 0
          %1724 = vperm.xlu0 %1723, %v1720
          %v1725 = vpop.permute.xlu0 %1724
          %v1727 = vperm.slane %v1725, 0
          %v1728 = vmul.f32 %v1721, %v1727
          %1729 = vst.msk [vmem:[%s348] sm:$0x3] %vm1561, %v1728
          %v1730 = vld [vmem:[#allocation6] sm:$0xf]
          %1732 = vset.pattern.permute.xlu0 0
          %1733 = vperm.xlu0 %1732, %v1715
          %v1734 = vpop.permute.xlu0 %1733
          %v1736 = vperm.slane %v1734, 0
          %v1737 = vmul.f32 %v1730, %v1736
          %1738 = vst.msk [vmem:[%s355] sm:$0xf] %vm1704, %v1737
        $region60: #{tpu_custom_call.1} parent=43 // pred_fallthru
          _
        %s1739 = sand.u32 %s194, 1
        %s1740 = scalar_lea.sflag [#allocation13], %s1739
        %s1741 = sand.u32 %s194, 1
        %s1742 = smul.addr %s1741, 2
        %s1743 = scalar_lea.vmem [#allocation16], %s1742
        %s1744 = sand.u32 %s220, 1
        %s1745 = scalar_lea.sflag [#allocation18], %s1744
        %s1746 = sand.u32 %s220, 1
        %s1747 = smul.addr %s1746, 4
        %s1748 = scalar_lea.vmem [#allocation17], %s1747
        // Predicated region
        $region61: #{tpu_custom_call.1} parent=43 // pred_check
          %p1749 = pneg %p204
        $region62: #{tpu_custom_call.1} parent=43 // pred_check_branch
          %1751 = sbr.rel (%p1749) target = $region64
        $region63: #{tpu_custom_call.1} parent=43 // pred_region
          %1753 = vsyncadd %s1740, 0
          %s1754 = smul.addr %s45, 2
          %s1755 = scalar_lea.hbm %s7, %s1754
          %s1757 = sshll.u32 %s1743, 4
          %s1758 = int_to_ptr.vmem [resolvable:$true] %s1757
          %s1759 = sshll.u32 %s1755, 4
          %s1760 = int_to_ptr.hbm [resolvable:$true] %s1759
          %1762 = dma.vmem_to_hbm [thread:$0]  %s1758, 32, %s1760, %s1740
        $region64: #{tpu_custom_call.1} parent=43 // pred_fallthru
          _
        // Predicated region
        $region65: #{tpu_custom_call.1} parent=43 // pred_check
          %p1763 = pneg %p230
        $region66: #{tpu_custom_call.1} parent=43 // pred_check_branch
          %1765 = sbr.rel (%p1763) target = $region68
        $region67: #{tpu_custom_call.1} parent=43 // pred_region
          %1767 = vsyncadd %s1745, 0
          %s1768 = smul.addr %s45, 4
          %s1769 = scalar_lea.hbm %s8, %s1768
          %s1771 = sshll.u32 %s1748, 4
          %s1772 = int_to_ptr.vmem [resolvable:$true] %s1771
          %s1773 = sshll.u32 %s1769, 4
          %s1774 = int_to_ptr.hbm [resolvable:$true] %s1773
          %1776 = dma.vmem_to_hbm [thread:$0]  %s1772, 64, %s1774, %s1745
        $region68: #{tpu_custom_call.1} parent=43 // pred_fallthru
          _
      $region44: #{tpu_custom_call.1} parent=5 // pred_fallthru
        _
      %p1777 = scmp.le.s32.totalorder 2, %s36
      // Predicated region
      $region69: #{tpu_custom_call.1} parent=5 // pred_check
        %p1778 = pneg %p1777
      $region70: #{tpu_custom_call.1} parent=5 // pred_check_branch
        %1780 = sbr.rel (%p1778) target = $region72
      $region71: #{tpu_custom_call.1} parent=5 // pred_region
        %s1781 = ssub.s32 %s36, 2
        // Predicated region
        $region73: #{tpu_custom_call.1} parent=71 // pred_check
          %p1782 = pneg %p210
        $region74: #{tpu_custom_call.1} parent=71 // pred_check_branch
          %1784 = sbr.rel (%p1782) target = $region76
        $region75: #{tpu_custom_call.1} parent=71 // pred_region
          %s1785 = sand.u32 %s195, 1
          %s1786 = scalar_lea.sflag [#allocation13], %s1785
          %s1787 = sand.u32 %s195, 1
          %s1788 = smul.addr %s1787, 2
          %s1789 = scalar_lea.vmem [#allocation16], %s1788
          %1791 = dma.done %s1786, 32
        $region76: #{tpu_custom_call.1} parent=71 // pred_fallthru
          _
        // Predicated region
        $region77: #{tpu_custom_call.1} parent=71 // pred_check
          %p1792 = pneg %p236
        $region78: #{tpu_custom_call.1} parent=71 // pred_check_branch
          %1794 = sbr.rel (%p1792) target = $region80
        $region79: #{tpu_custom_call.1} parent=71 // pred_region
          %s1795 = sand.u32 %s221, 1
          %s1796 = scalar_lea.sflag [#allocation18], %s1795
          %s1797 = sand.u32 %s221, 1
          %s1798 = smul.addr %s1797, 4
          %s1799 = scalar_lea.vmem [#allocation17], %s1798
          %1801 = dma.done %s1796, 64
        $region80: #{tpu_custom_call.1} parent=71 // pred_fallthru
          _
      $region72: #{tpu_custom_call.1} parent=5 // pred_fallthru
        _
    $region6: #{tpu_custom_call.1} parent=1 // loop_footer
      %s40 = sadd.s32 1, %s36
    $region7: #{tpu_custom_call.1} parent=1 // loop_footer_branch
      %35 = sbr.rel target = $region3
    $region8: #{tpu_custom_call.1} parent=1 // loop_exit
      _
    %1802 = vsyncpa [#allocation12], 1
    %s1803 = scalar_lea.sflag [#allocation12], 1
    %1804 = vsyncpa %s1803, 1
    %1805 = vsyncpa [#allocation15], 1
    %1806 = vsyncpa [#allocation13], 1
    %s1807 = scalar_lea.sflag [#allocation13], 1
    %1808 = vsyncpa %s1807, 1
    %1809 = vsyncpa [#allocation18], 1
    %s1810 = scalar_lea.sflag [#allocation18], 1
    %1811 = vsyncpa %s1810, 1

</llo_original>
